<compile_context>
chip_gen: v5e
topology: v5e:2x2
jax: 0.10.0
libtpu: 0.0.40
codegen_flags: <defaults>
</compile_context>

<pallas_src>
import functools

import jax
import jax.numpy as jnp
from jax.experimental import pallas as pl
from jax.experimental.pallas import tpu as pltpu


# ----------------------------------------------------------------------------
# helpers
# ----------------------------------------------------------------------------
def _round_up(x, m):
    return ((x + m - 1) // m) * m


# Tile caps (review: 256 blocks hit ~63% of roofline vs ~85% at 512).
# Per-step working set at 512/512/1024 bf16 + f32 acc + double buffering is
# ~7 MiB -> safely under v7x's 32 MiB scoped default / 64 MiB physical.
_TM_MAX, _TN_MAX, _TK_MAX = 512, 512, 1024
_VMEM_LIMIT_BYTES = 32 * 1024 * 1024


def _pick_tile(dim, cap, align):
    """Return (tile, padded_dim). tile is the largest multiple of `align`
    <= cap that divides round_up(dim, align) -> no padding-to-the-cap waste."""
    padded = _round_up(dim, align)
    if padded <= cap:
        return padded, padded
    best = align
    t = align
    while t <= cap:
        if padded % t == 0:
            best = t
        t += align
    return best, padded


# ----------------------------------------------------------------------------
# Pallas kernel 1: tiled matmul + bias (+ optional fused GELU epilogue)
# ----------------------------------------------------------------------------
def _matmul_kernel(x_ref, w_ref, b_ref, o_ref, acc_ref, *, activation):
    k = pl.program_id(2)

    @pl.when(k == 0)
    def _():
        acc_ref[...] = jnp.zeros_like(acc_ref)

    acc_ref[...] += jnp.dot(x_ref[...], w_ref[...],
                            preferred_element_type=jnp.float32)

    @pl.when(k == pl.num_programs(2) - 1)
    def _():
        out = acc_ref[...] + b_ref[...].astype(jnp.float32)
        if activation == "gelu":
            # TODO(synk): PyTorch nn.GELU default is the exact erf form; this
            # uses the tanh approximation (cheap EUP path on TPU).
            out = jax.nn.gelu(out)
        o_ref[...] = out.astype(o_ref.dtype)


def linear_pallas(x2d, w, b, activation=None, out_dtype=jnp.float32):
    """x2d: (M, K), w: (K, N), b: (N,) -> (M, N) in out_dtype."""
    M, K = x2d.shape
    K2, N = w.shape
    assert K == K2, (K, K2)

    tm, Mp = _pick_tile(M, _TM_MAX, 8)
    tn, Np = _pick_tile(N, _TN_MAX, 128)
    tk, Kp = _pick_tile(K, _TK_MAX, 128)

    xp = x2d if x2d.dtype == jnp.bfloat16 else x2d.astype(jnp.bfloat16)
    if (Mp, Kp) != (M, K):
        xp = jnp.pad(xp, ((0, Mp - M), (0, Kp - K)))
    wp = w if w.dtype == jnp.bfloat16 else w.astype(jnp.bfloat16)
    if (Kp, Np) != (K, N):
        wp = jnp.pad(wp, ((0, Kp - K), (0, Np - N)))
    bp = b.astype(jnp.float32).reshape(1, N)
    if Np != N:
        bp = jnp.pad(bp, ((0, 0), (0, Np - N)))

    grid = (Mp // tm, Np // tn, Kp // tk)
    out = pl.pallas_call(
        functools.partial(_matmul_kernel, activation=activation),
        out_shape=jax.ShapeDtypeStruct((Mp, Np), out_dtype),
        grid=grid,
        in_specs=[
            pl.BlockSpec((tm, tk), lambda i, j, k: (i, k)),
            pl.BlockSpec((tk, tn), lambda i, j, k: (k, j)),
            pl.BlockSpec((1, tn), lambda i, j, k: (0, j)),
        ],
        out_specs=pl.BlockSpec((tm, tn), lambda i, j, k: (i, j)),
        scratch_shapes=[pltpu.VMEM((tm, tn), jnp.float32)],
        compiler_params=pltpu.CompilerParams(
            dimension_semantics=("parallel", "parallel", "arbitrary"),
            vmem_limit_bytes=_VMEM_LIMIT_BYTES),
    )(xp, wp, bp)
    if (Mp, Np) != (M, N):
        out = out[:M, :N]
    return out


# ----------------------------------------------------------------------------
# Pallas kernel 2: tiled matmul + bias + fused residual-add + LayerNorm.
# N tile spans the whole (padded) hidden row so LN statistics are computed in
# the k==last epilogue; padded lanes are masked out of mean/var.
# ----------------------------------------------------------------------------
def _matmul_ln_kernel(x_ref, w_ref, b_ref, res_ref, g_ref, beta_ref,
                      o_ref, acc_ref, *, n_valid, eps):
    k = pl.program_id(1)

    @pl.when(k == 0)
    def _():
        acc_ref[...] = jnp.zeros_like(acc_ref)

    acc_ref[...] += jnp.dot(x_ref[...], w_ref[...],
                            preferred_element_type=jnp.float32)

    @pl.when(k == pl.num_programs(1) - 1)
    def _():
        y = (acc_ref[...] + b_ref[...].astype(jnp.float32)
             + res_ref[...].astype(jnp.float32))
        tn = y.shape[-1]
        if n_valid == tn:
            mu = jnp.mean(y, axis=-1, keepdims=True)
            diff = y - mu
            var = jnp.mean(diff * diff, axis=-1, keepdims=True)
        else:
            col = jax.lax.broadcasted_iota(jnp.int32, y.shape, 1)
            valid = col < n_valid
            y = jnp.where(valid, y, 0.0)
            mu = jnp.sum(y, axis=-1, keepdims=True) * (1.0 / n_valid)
            diff = jnp.where(valid, y - mu, 0.0)
            var = jnp.sum(diff * diff, axis=-1, keepdims=True) * (1.0 / n_valid)
        out = diff * jax.lax.rsqrt(var + eps)
        out = out * g_ref[...].astype(jnp.float32) + beta_ref[...].astype(jnp.float32)
        o_ref[...] = out.astype(o_ref.dtype)


def linear_residual_ln_pallas(x2d, w, b, res2d, gamma, beta,
                              eps=1e-12, out_dtype=jnp.bfloat16):
    """out = LayerNorm(res2d + x2d @ w + b) * gamma + beta   (row-wise LN)."""
    M, K = x2d.shape
    K2, N = w.shape
    assert K == K2 and res2d.shape == (M, N)

    tm, Mp = _pick_tile(M, _TM_MAX, 8)
    tk, Kp = _pick_tile(K, _TK_MAX, 128)
    Np = _round_up(N, 128)            # tn == Np: block spans the whole LN row

    xp = x2d if x2d.dtype == jnp.bfloat16 else x2d.astype(jnp.bfloat16)
    if (Mp, Kp) != (M, K):
        xp = jnp.pad(xp, ((0, Mp - M), (0, Kp - K)))
    wp = w if w.dtype == jnp.bfloat16 else w.astype(jnp.bfloat16)
    if (Kp, Np) != (K, N):
        wp = jnp.pad(wp, ((0, Kp - K), (0, Np - N)))
    rp = res2d if res2d.dtype == jnp.bfloat16 else res2d.astype(jnp.bfloat16)
    if (Mp, Np) != (M, N):
        rp = jnp.pad(rp, ((0, Mp - M), (0, Np - N)))
    bp = b.astype(jnp.float32).reshape(1, N)
    gp = gamma.astype(jnp.float32).reshape(1, N)
    betap = beta.astype(jnp.float32).reshape(1, N)
    if Np != N:
        bp = jnp.pad(bp, ((0, 0), (0, Np - N)))
        gp = jnp.pad(gp, ((0, 0), (0, Np - N)))
        betap = jnp.pad(betap, ((0, 0), (0, Np - N)))

    grid = (Mp // tm, Kp // tk)
    out = pl.pallas_call(
        functools.partial(_matmul_ln_kernel, n_valid=N, eps=eps),
        out_shape=jax.ShapeDtypeStruct((Mp, Np), out_dtype),
        grid=grid,
        in_specs=[
            pl.BlockSpec((tm, tk), lambda i, k: (i, k)),
            pl.BlockSpec((tk, Np), lambda i, k: (k, 0)),
            pl.BlockSpec((1, Np), lambda i, k: (0, 0)),
            pl.BlockSpec((tm, Np), lambda i, k: (i, 0)),
            pl.BlockSpec((1, Np), lambda i, k: (0, 0)),
            pl.BlockSpec((1, Np), lambda i, k: (0, 0)),
        ],
        out_specs=pl.BlockSpec((tm, Np), lambda i, k: (i, 0)),
        scratch_shapes=[pltpu.VMEM((tm, Np), jnp.float32)],
        compiler_params=pltpu.CompilerParams(
            dimension_semantics=("parallel", "arbitrary"),
            vmem_limit_bytes=_VMEM_LIMIT_BYTES),
    )(xp, wp, bp, rp, gp, betap)
    if (Mp, Np) != (M, N):
        out = out[:M, :N]
    return out


# ----------------------------------------------------------------------------
# Pallas kernel 3: fused multi-head attention.  Grid over batch; one step does
# all heads of one batch element.  Input is the fused (S,3H) QKV slab (head
# slices are static lane slices), context is one lane-dense (S,H) store, probs
# land directly in (B,nh,S,S) HF layout as bf16 (skipped entirely in eval).
# ----------------------------------------------------------------------------
# TODO(synk): KV-tile (flash-style online softmax) for S >~ 1024 so the
# resident (S,S) scores / probs fit v5e's 16 MiB and v7x's 32 MiB scoped VMEM.
def _attention_kernel(qkv_ref, m_ref, ctx_ref, *probs_refs,
                      n_heads, head_dim, hidden, scale, out_probs):
    probs_ref = probs_refs[0] if out_probs else None
    mask = m_ref[0]                                  # (1, S) additive, f32
    ctx_parts = []
    for h in range(n_heads):
        q = qkv_ref[0, :, h * head_dim:(h + 1) * head_dim]                    # (S, hd)
        k = qkv_ref[0, :, hidden + h * head_dim:hidden + (h + 1) * head_dim]
        v = qkv_ref[0, :, 2 * hidden + h * head_dim:2 * hidden + (h + 1) * head_dim]
        s = jax.lax.dot_general(q, k, (((1,), (1,)), ((), ())),
                                preferred_element_type=jnp.float32)           # (S, S)
        s = s * scale + mask
        mx = jnp.max(s, axis=-1, keepdims=True)
        p = jnp.exp(s - mx)
        denom = jnp.sum(p, axis=-1, keepdims=True)
        p = p * pl.reciprocal(denom)                 # exact; probs sum to ~1
        ctx = jnp.dot(p.astype(v.dtype), v, preferred_element_type=jnp.float32)
        ctx_parts.append(ctx)
        if out_probs:
            probs_ref[0, h] = p.astype(probs_ref.dtype)
    # one lane-dense (S, H) store instead of per-head (S, hd) partial stores
    ctx_ref[0] = jnp.concatenate(ctx_parts, axis=-1).astype(ctx_ref.dtype)


def attention_pallas(qkv, add_mask, n_heads, hidden, out_probs=True):
    """qkv: (B, S, 3H) bf16 (columns [Q|K|V], head-major within each);
    add_mask: (B, 1, S) additive f32.  Returns (ctx (B,S,H) bf16, probs|None)."""
    B, S, threeH = qkv.shape
    assert threeH == 3 * hidden
    hd = hidden // n_heads
    scale = 1.0 / float(hd) ** 0.5

    if out_probs:
        out_shape = (jax.ShapeDtypeStruct((B, S, hidden), jnp.bfloat16),
                     jax.ShapeDtypeStruct((B, n_heads, S, S), jnp.bfloat16))
        out_specs = (pl.BlockSpec((1, S, hidden), lambda b: (b, 0, 0)),
                     pl.BlockSpec((1, n_heads, S, S), lambda b: (b, 0, 0, 0)))
    else:
        out_shape = jax.ShapeDtypeStruct((B, S, hidden), jnp.bfloat16)
        out_specs = pl.BlockSpec((1, S, hidden), lambda b: (b, 0, 0))

    outs = pl.pallas_call(
        functools.partial(_attention_kernel, n_heads=n_heads, head_dim=hd,
                          hidden=hidden, scale=scale, out_probs=out_probs),
        out_shape=out_shape,
        grid=(B,),
        in_specs=[
            pl.BlockSpec((1, S, threeH), lambda b: (b, 0, 0)),
            pl.BlockSpec((1, 1, S), lambda b: (b, 0, 0)),   # no head replication
        ],
        out_specs=out_specs,
        compiler_params=pltpu.CompilerParams(
            dimension_semantics=("parallel",),
            vmem_limit_bytes=_VMEM_LIMIT_BYTES),
    )(qkv, add_mask)

    if out_probs:
        ctx, probs = outs
        return ctx, probs
    return outs, None


# ----------------------------------------------------------------------------
# Deterministic parameter construction (synthetic; no checkpoint loading).
# Matmul weights stored as bf16 (MXU-native); norms/biases/embeddings f32.
# ----------------------------------------------------------------------------
def _init(key, shape, dtype=jnp.bfloat16, scale=0.02):
    return (scale * jax.random.normal(key, shape)).astype(dtype)


def make_params(vocab_size, hidden, n_layers, n_heads, ffn, n_labels, fit_size):
    root = jax.random.PRNGKey(0)
    p = {}
    p["tok_emb"] = _init(jax.random.fold_in(root, 1), (vocab_size, hidden), jnp.float32)
    p["pos_emb"] = _init(jax.random.fold_in(root, 2), (512, hidden), jnp.float32)
    layers = []
    for l in range(n_layers):
        k = jax.random.fold_in(root, 100 + l)
        ks = jax.random.split(k, 8)
        wq = _init(ks[0], (hidden, hidden))
        wk = _init(ks[1], (hidden, hidden))
        wv = _init(ks[2], (hidden, hidden))
        layers.append(dict(
            # fused QKV weight: columns [Q | K | V], head-major within each
            w_qkv=jnp.concatenate([wq, wk, wv], axis=-1),
            b_qkv=jnp.zeros((3 * hidden,), jnp.float32),
            wo=_init(ks[3], (hidden, hidden)), bo=jnp.zeros((hidden,), jnp.float32),
            w1=_init(ks[4], (hidden, ffn)),    b1=jnp.zeros((ffn,), jnp.float32),
            w2=_init(ks[5], (ffn, hidden)),    b2=jnp.zeros((hidden,), jnp.float32),
            ln1_g=jnp.ones((hidden,), jnp.float32), ln1_b=jnp.zeros((hidden,), jnp.float32),
            ln2_g=jnp.ones((hidden,), jnp.float32), ln2_b=jnp.zeros((hidden,), jnp.float32),
        ))
    p["layers"] = layers
    p["cls_w"] = _init(jax.random.fold_in(root, 500), (hidden, n_labels))
    p["cls_b"] = jnp.zeros((n_labels,), jnp.float32)
    # Model.fit_dense: nn.Linear(hidden_size, fit_size)
    p["fit_w"] = _init(jax.random.fold_in(root, 600), (hidden, fit_size))
    p["fit_b"] = jnp.zeros((fit_size,), jnp.float32)
    return p


# ----------------------------------------------------------------------------
# Synthetic encoder forward (BERT/RoBERTa-ish): hidden_states, attentions,
# logits — mirroring output_hidden_states / output_attentions / return_dict.
# Activations stay bf16 end-to-end; residual+LN fused into matmul epilogues.
# ----------------------------------------------------------------------------
def encoder_forward(params, input_ids, attention_mask, n_heads,
                    output_attentions=True):
    B, S = input_ids.shape
    H = params["tok_emb"].shape[-1]

    h = params["tok_emb"][input_ids] + params["pos_emb"][:S][None, :, :]
    h2 = h.reshape(B * S, H).astype(jnp.bfloat16)
    hidden_states = [h2.reshape(B, S, H)]
    attentions = []

    # additive mask (B,1,S): 0 where attended, -1e9 where padded (mask False)
    add_mask = jnp.where(attention_mask, 0.0, -1e9).astype(jnp.float32)[:, None, :]

    for lp in params["layers"]:
        # fused QKV projection; bf16 output -> free reshape to (B,S,3H), no
        # head transposes / splits anywhere.
        qkv = linear_pallas(h2, lp["w_qkv"], lp["b_qkv"],
                            out_dtype=jnp.bfloat16).reshape(B, S, 3 * H)

        ctx, probs = attention_pallas(qkv, add_mask, n_heads, H,
                                      out_probs=output_attentions)
        if output_attentions:
            attentions.append(probs)

        # attn-out matmul with fused residual-add + LayerNorm epilogue
        h2 = linear_residual_ln_pallas(ctx.reshape(B * S, H), lp["wo"], lp["bo"],
                                       h2, lp["ln1_g"], lp["ln1_b"])

        # FFN: GELU fused into w1's epilogue (bf16 out), residual+LN into w2's
        mid = linear_pallas(h2, lp["w1"], lp["b1"], activation="gelu",
                            out_dtype=jnp.bfloat16)
        h2 = linear_residual_ln_pallas(mid, lp["w2"], lp["b2"],
                                       h2, lp["ln2_g"], lp["ln2_b"])
        hidden_states.append(h2.reshape(B, S, H))

    h3 = h2.reshape(B, S, H)
    # classification logits from CLS token: tiny (M=B, K=H, N=2) -> plain dot
    cls_in = h3[:, 0, :].astype(jnp.float32)
    logits = cls_in @ params["cls_w"].astype(jnp.float32) + params["cls_b"]

    return {
        "last_hidden_state": h3,
        "hidden_states": tuple(hidden_states),
        "attentions": tuple(attentions),
        "logits": logits,
    }


# ----------------------------------------------------------------------------
# Model.forward equivalent.
# ----------------------------------------------------------------------------
def model_forward(params, input_ids, mod="train", is_student=False, n_heads=2):
    attention_mask = input_ids != 1          # input_ids.ne(1)  (pad token id 1)
    need_attn = (mod == "train")             # eval returns logits only
    outputs = encoder_forward(params, input_ids, attention_mask, n_heads,
                              output_attentions=need_attn)
    if is_student:
        seq_out = outputs["hidden_states"]
        # Batch fit_dense over all L+1 layers: one kernel, fit_w DMA'd once.
        L1 = len(seq_out)
        B, S, H = seq_out[0].shape
        stacked = jnp.stack(seq_out, axis=0).reshape(L1 * B * S, H)
        fitted = linear_pallas(stacked, params["fit_w"], params["fit_b"],
                               out_dtype=jnp.float32)
        fitted = fitted.reshape(L1, B, S, -1)
        outputs["hidden_states"] = tuple(fitted[i] for i in range(L1))
    if mod == "train":
        return outputs
    else:
        return outputs["logits"]


if __name__ == "__main__":
    # Small shapes: batch=2, seq=8, hidden=32, heads=2, ffn=64, fit_size=64
    VOCAB, HIDDEN, LAYERS, HEADS, FFN, LABELS, FIT = 32, 32, 2, 2, 64, 2, 64
    B, S = 2, 8

    params = make_params(VOCAB, HIDDEN, LAYERS, HEADS, FFN, LABELS, FIT)

    key = jax.random.PRNGKey(0)
    input_ids = jax.random.randint(key, (B, S), 0, VOCAB, dtype=jnp.int32)
    # make sure a padding token (id 1) appears so the mask path is exercised
    input_ids = input_ids.at[:, -1].set(1)

    fwd = jax.jit(model_forward, static_argnames=("mod", "is_student", "n_heads"))

    # train mode, student distillation path (fit_dense applied to every layer)
    out = fwd(params, input_ids, mod="train", is_student=True, n_heads=HEADS)
    out = jax.tree_util.tree_map(jax.block_until_ready, out)

    # eval mode -> logits only (attention-probs output skipped in the kernel)
    logits = fwd(params, input_ids, mod="eval", is_student=False, n_heads=HEADS)
    logits = jax.block_until_ready(logits)

    assert logits.shape == (B, LABELS)
    assert len(out["hidden_states"]) == LAYERS + 1
    assert all(h.shape == (B, S, FIT) for h in out["hidden_states"])
    assert all(a.shape == (B, HEADS, S, S) for a in out["attentions"])

    print("KERNEL_OK")
</pallas_src>

<mosaic_0001>
module attributes {stable_mosaic.version = 11 : i64} {
  func.func @_matmul_kernel(%arg0: i32, %arg1: i32, %arg2: i32, %arg3: memref<16x128xbf16, #tpu.memory_space<vmem>>, %arg4: memref<128x128xbf16, #tpu.memory_space<vmem>>, %arg5: memref<1x128xf32, #tpu.memory_space<vmem>>, %arg6: memref<16x128xbf16, #tpu.memory_space<vmem>>, %arg7: memref<16x128xf32, #tpu.memory_space<vmem>>) attributes {dimension_semantics = [#tpu.dimension_semantics<parallel>, #tpu.dimension_semantics<parallel>, #tpu.dimension_semantics<arbitrary>], iteration_bounds = array<i64: 1, 1, 1>, scalar_prefetch = 0 : i64, scratch_operands = 1 : i64, tpu.core_type = #tpu.core_type<tc>, window_params = [{transform_indices = @transform_0, window_bounds = array<i64: 16, 128>}, {transform_indices = @transform_1, window_bounds = array<i64: 128, 128>}, {transform_indices = @transform_2, window_bounds = array<i64: 1, 128>}, {transform_indices = @transform_3, window_bounds = array<i64: 16, 128>}]} {
    %c0_i32 = arith.constant 0 : i32
    %0 = arith.cmpi eq, %arg2, %c0_i32 : i32
    %1 = arith.extui %0 : i1 to i32
    %c0_i32_0 = arith.constant 0 : i32
    %2 = arith.cmpi ne, %1, %c0_i32_0 : i32
    scf.if %2 {
      %cst_10 = arith.constant 0.000000e+00 : f32
      %12 = vector.broadcast %cst_10 : f32 to vector<16x128xf32>
      %c0_11 = arith.constant 0 : index
      %c0_12 = arith.constant 0 : index
      %13 = vector.load %arg7[%c0_11, %c0_12] : memref<16x128xf32, #tpu.memory_space<vmem>>, vector<16x128xf32>
      tpu.vector_store %arg7[%c0_11, %c0_12], %12 {strides = array<i32>} : memref<16x128xf32, #tpu.memory_space<vmem>>, vector<16x128xf32>,
    } else {
    }
    %c0 = arith.constant 0 : index
    %c0_1 = arith.constant 0 : index
    %3 = vector.load %arg7[%c0, %c0_1] : memref<16x128xf32, #tpu.memory_space<vmem>>, vector<16x128xf32>
    %c0_2 = arith.constant 0 : index
    %c0_3 = arith.constant 0 : index
    %4 = vector.load %arg3[%c0_2, %c0_3] : memref<16x128xbf16, #tpu.memory_space<vmem>>, vector<16x128xbf16>
    %c0_4 = arith.constant 0 : index
    %c0_5 = arith.constant 0 : index
    %5 = vector.load %arg4[%c0_4, %c0_5] : memref<128x128xbf16, #tpu.memory_space<vmem>>, vector<128x128xbf16>
    %cst = arith.constant dense<0.000000e+00> : vector<16x128xf32>
    %6 = tpu.matmul %4, %5, %cst {dimension_numbers = #tpu.dot_dimension_numbers<[1], [0], [0], [1], [0, 0, 1, 1], [], []>} : vector<16x128xbf16>, vector<128x128xbf16>, vector<16x128xf32> -> vector<16x128xf32>
    %7 = arith.addf %3, %6 : vector<16x128xf32>
    %c0_6 = arith.constant 0 : index
    %c0_7 = arith.constant 0 : index
    %8 = vector.load %arg7[%c0_6, %c0_7] : memref<16x128xf32, #tpu.memory_space<vmem>>, vector<16x128xf32>
    tpu.vector_store %arg7[%c0_6, %c0_7], %7 {strides = array<i32>} : memref<16x128xf32, #tpu.memory_space<vmem>>, vector<16x128xf32>,
    %c0_i32_8 = arith.constant 0 : i32
    %9 = arith.cmpi eq, %arg2, %c0_i32_8 : i32
    %10 = arith.extui %9 : i1 to i32
    %c0_i32_9 = arith.constant 0 : i32
    %11 = arith.cmpi ne, %10, %c0_i32_9 : i32
    scf.if %11 {
      %c0_10 = arith.constant 0 : index
      %c0_11 = arith.constant 0 : index
      %12 = vector.load %arg7[%c0_10, %c0_11] : memref<16x128xf32, #tpu.memory_space<vmem>>, vector<16x128xf32>
      %c0_12 = arith.constant 0 : index
      %c0_13 = arith.constant 0 : index
      %13 = vector.load %arg5[%c0_12, %c0_13] : memref<1x128xf32, #tpu.memory_space<vmem>>, vector<1x128xf32>
      %14 = vector.broadcast %13 : vector<1x128xf32> to vector<16x128xf32>
      %15 = arith.addf %12, %14 : vector<16x128xf32>
      %16 = arith.truncf %15 : vector<16x128xf32> to vector<16x128xbf16>
      %c0_14 = arith.constant 0 : index
      %c0_15 = arith.constant 0 : index
      %17 = vector.load %arg6[%c0_14, %c0_15] : memref<16x128xbf16, #tpu.memory_space<vmem>>, vector<16x128xbf16>
      tpu.vector_store %arg6[%c0_14, %c0_15], %16 {strides = array<i32>} : memref<16x128xbf16, #tpu.memory_space<vmem>>, vector<16x128xbf16>,
    } else {
    }
    return
  }
  func.func @transform_0(%arg0: i32, %arg1: i32, %arg2: i32) -> (i32, i32) {
    %c0_i32 = arith.constant 0 : i32
    return %arg0, %arg2 : i32, i32
  }
  func.func @transform_1(%arg0: i32, %arg1: i32, %arg2: i32) -> (i32, i32) {
    %c0_i32 = arith.constant 0 : i32
    return %arg2, %arg1 : i32, i32
  }
  func.func @transform_2(%arg0: i32, %arg1: i32, %arg2: i32) -> (i32, i32) {
    %c0_i32 = arith.constant 0 : i32
    %c0_i32_0 = arith.constant 0 : i32
    return %c0_i32, %arg1 : i32, i32
  }
  func.func @transform_3(%arg0: i32, %arg1: i32, %arg2: i32) -> (i32, i32) {
    %c0_i32 = arith.constant 0 : i32
    return %arg0, %arg1 : i32, i32
  }
}

module attributes {stable_mosaic.version = 11 : i64} {
  func.func @_attention_kernel(%arg0: i32, %arg1: memref<1x8x96xbf16, #tpu.memory_space<vmem>>, %arg2: memref<1x1x8xf32, #tpu.memory_space<vmem>>, %arg3: memref<1x8x32xbf16, #tpu.memory_space<vmem>>, %arg4: memref<1x2x8x8xbf16, #tpu.memory_space<vmem>>) attributes {dimension_semantics = [#tpu.dimension_semantics<parallel>], iteration_bounds = array<i64: 2>, scalar_prefetch = 0 : i64, scratch_operands = 0 : i64, tpu.core_type = #tpu.core_type<tc>, window_params = [{transform_indices = @transform_0, window_bounds = array<i64: 1, 8, 96>}, {transform_indices = @transform_1, window_bounds = array<i64: 1, 1, 8>}, {transform_indices = @transform_2, window_bounds = array<i64: 1, 8, 32>}, {transform_indices = @transform_3, window_bounds = array<i64: 1, 2, 8, 8>}]} {
    %c0 = arith.constant 0 : index
    %c0_0 = arith.constant 0 : index
    %c0_1 = arith.constant 0 : index
    %0 = vector.load %arg2[%c0, %c0_0, %c0_1] : memref<1x1x8xf32, #tpu.memory_space<vmem>>, vector<1x1x8xf32>
    %1 = vector.shape_cast %0 : vector<1x1x8xf32> to vector<1x8xf32>
    %c0_2 = arith.constant 0 : index
    %c0_3 = arith.constant 0 : index
    %c0_4 = arith.constant 0 : index
    %2 = vector.load %arg1[%c0_2, %c0_3, %c0_4] : memref<1x8x96xbf16, #tpu.memory_space<vmem>>, vector<1x8x16xbf16>
    %3 = vector.shape_cast %2 : vector<1x8x16xbf16> to vector<8x16xbf16>
    %c0_5 = arith.constant 0 : index
    %c0_6 = arith.constant 0 : index
    %c32 = arith.constant 32 : index
    %4 = vector.load %arg1[%c0_5, %c0_6, %c32] : memref<1x8x96xbf16, #tpu.memory_space<vmem>>, vector<1x8x16xbf16>
    %5 = vector.shape_cast %4 : vector<1x8x16xbf16> to vector<8x16xbf16>
    %c0_7 = arith.constant 0 : index
    %c0_8 = arith.constant 0 : index
    %c64 = arith.constant 64 : index
    %6 = vector.load %arg1[%c0_7, %c0_8, %c64] : memref<1x8x96xbf16, #tpu.memory_space<vmem>>, vector<1x8x16xbf16>
    %7 = vector.shape_cast %6 : vector<1x8x16xbf16> to vector<8x16xbf16>
    %cst = arith.constant dense<0.000000e+00> : vector<8x8xf32>
    %8 = tpu.matmul %3, %5, %cst {dimension_numbers = #tpu.dot_dimension_numbers<[1], [1], [0], [0], [0, 0, 1, 0], [], []>} : vector<8x16xbf16>, vector<8x16xbf16>, vector<8x8xf32> -> vector<8x8xf32>
    %cst_9 = arith.constant 2.500000e-01 : f32
    %9 = vector.broadcast %cst_9 : f32 to vector<8x8xf32>
    %10 = arith.mulf %8, %9 : vector<8x8xf32>
    %11 = vector.broadcast %1 : vector<1x8xf32> to vector<8x8xf32>
    %12 = arith.addf %10, %11 : vector<8x8xf32>
    %cst_10 = arith.constant dense<0xFF800000> : vector<8xf32>
    %13 = vector.multi_reduction <maximumf>, %12, %cst_10 [1] : vector<8x8xf32> to vector<8xf32>
    %14 = vector.shape_cast %13 : vector<8xf32> to vector<8x1xf32>
    %15 = vector.broadcast %14 : vector<8x1xf32> to vector<8x8xf32>
    %16 = arith.subf %12, %15 : vector<8x8xf32>
    %17 = math.exp %16 : vector<8x8xf32>
    %cst_11 = arith.constant dense<0.000000e+00> : vector<8xf32>
    %18 = vector.multi_reduction <add>, %17, %cst_11 [1] : vector<8x8xf32> to vector<8xf32>
    %19 = vector.shape_cast %18 : vector<8xf32> to vector<8x1xf32>
    %20 = tpu.reciprocal %19 : vector<8x1xf32> -> vector<8x1xf32>
    %21 = vector.broadcast %20 : vector<8x1xf32> to vector<8x8xf32>
    %22 = arith.mulf %17, %21 : vector<8x8xf32>
    %23 = arith.truncf %22 : vector<8x8xf32> to vector<8x8xbf16>
    %cst_12 = arith.constant dense<0.000000e+00> : vector<8x16xf32>
    %24 = tpu.matmul %23, %7, %cst_12 {dimension_numbers = #tpu.dot_dimension_numbers<[1], [0], [0], [1], [0, 0, 1, 1], [], []>} : vector<8x8xbf16>, vector<8x16xbf16>, vector<8x16xf32> -> vector<8x16xf32>
    %25 = arith.truncf %22 : vector<8x8xf32> to vector<8x8xbf16>
    %c0_13 = arith.constant 0 : index
    %c0_14 = arith.constant 0 : index
    %c0_15 = arith.constant 0 : index
    %c0_16 = arith.constant 0 : index
    %26 = vector.load %arg4[%c0_13, %c0_14, %c0_15, %c0_16] : memref<1x2x8x8xbf16, #tpu.memory_space<vmem>>, vector<1x1x8x8xbf16>
    %27 = vector.shape_cast %26 : vector<1x1x8x8xbf16> to vector<8x8xbf16>
    %28 = vector.shape_cast %25 : vector<8x8xbf16> to vector<1x1x8x8xbf16>
    tpu.vector_store %arg4[%c0_13, %c0_14, %c0_15, %c0_16], %28 {strides = array<i32>} : memref<1x2x8x8xbf16, #tpu.memory_space<vmem>>, vector<1x1x8x8xbf16>,
    %c0_17 = arith.constant 0 : index
    %c0_18 = arith.constant 0 : index
    %c16 = arith.constant 16 : index
    %29 = vector.load %arg1[%c0_17, %c0_18, %c16] : memref<1x8x96xbf16, #tpu.memory_space<vmem>>, vector<1x8x16xbf16>
    %30 = vector.shape_cast %29 : vector<1x8x16xbf16> to vector<8x16xbf16>
    %c0_19 = arith.constant 0 : index
    %c0_20 = arith.constant 0 : index
    %c48 = arith.constant 48 : index
    %31 = vector.load %arg1[%c0_19, %c0_20, %c48] : memref<1x8x96xbf16, #tpu.memory_space<vmem>>, vector<1x8x16xbf16>
    %32 = vector.shape_cast %31 : vector<1x8x16xbf16> to vector<8x16xbf16>
    %c0_21 = arith.constant 0 : index
    %c0_22 = arith.constant 0 : index
    %c80 = arith.constant 80 : index
    %33 = vector.load %arg1[%c0_21, %c0_22, %c80] : memref<1x8x96xbf16, #tpu.memory_space<vmem>>, vector<1x8x16xbf16>
    %34 = vector.shape_cast %33 : vector<1x8x16xbf16> to vector<8x16xbf16>
    %cst_23 = arith.constant dense<0.000000e+00> : vector<8x8xf32>
    %35 = tpu.matmul %30, %32, %cst_23 {dimension_numbers = #tpu.dot_dimension_numbers<[1], [1], [0], [0], [0, 0, 1, 0], [], []>} : vector<8x16xbf16>, vector<8x16xbf16>, vector<8x8xf32> -> vector<8x8xf32>
    %cst_24 = arith.constant 2.500000e-01 : f32
    %36 = vector.broadcast %cst_24 : f32 to vector<8x8xf32>
    %37 = arith.mulf %35, %36 : vector<8x8xf32>
    %38 = vector.broadcast %1 : vector<1x8xf32> to vector<8x8xf32>
    %39 = arith.addf %37, %38 : vector<8x8xf32>
    %cst_25 = arith.constant dense<0xFF800000> : vector<8xf32>
    %40 = vector.multi_reduction <maximumf>, %39, %cst_25 [1] : vector<8x8xf32> to vector<8xf32>
    %41 = vector.shape_cast %40 : vector<8xf32> to vector<8x1xf32>
    %42 = vector.broadcast %41 : vector<8x1xf32> to vector<8x8xf32>
    %43 = arith.subf %39, %42 : vector<8x8xf32>
    %44 = math.exp %43 : vector<8x8xf32>
    %cst_26 = arith.constant dense<0.000000e+00> : vector<8xf32>
    %45 = vector.multi_reduction <add>, %44, %cst_26 [1] : vector<8x8xf32> to vector<8xf32>
    %46 = vector.shape_cast %45 : vector<8xf32> to vector<8x1xf32>
    %47 = tpu.reciprocal %46 : vector<8x1xf32> -> vector<8x1xf32>
    %48 = vector.broadcast %47 : vector<8x1xf32> to vector<8x8xf32>
    %49 = arith.mulf %44, %48 : vector<8x8xf32>
    %50 = arith.truncf %49 : vector<8x8xf32> to vector<8x8xbf16>
    %cst_27 = arith.constant dense<0.000000e+00> : vector<8x16xf32>
    %51 = tpu.matmul %50, %34, %cst_27 {dimension_numbers = #tpu.dot_dimension_numbers<[1], [0], [0], [1], [0, 0, 1, 1], [], []>} : vector<8x8xbf16>, vector<8x16xbf16>, vector<8x16xf32> -> vector<8x16xf32>
    %52 = arith.truncf %49 : vector<8x8xf32> to vector<8x8xbf16>
    %c0_28 = arith.constant 0 : index
    %c1 = arith.constant 1 : index
    %c0_29 = arith.constant 0 : index
    %c0_30 = arith.constant 0 : index
    %53 = vector.load %arg4[%c0_28, %c1, %c0_29, %c0_30] : memref<1x2x8x8xbf16, #tpu.memory_space<vmem>>, vector<1x1x8x8xbf16>
    %54 = vector.shape_cast %53 : vector<1x1x8x8xbf16> to vector<8x8xbf16>
    %55 = vector.shape_cast %52 : vector<8x8xbf16> to vector<1x1x8x8xbf16>
    tpu.vector_store %arg4[%c0_28, %c1, %c0_29, %c0_30], %55 {strides = array<i32>} : memref<1x2x8x8xbf16, #tpu.memory_space<vmem>>, vector<1x1x8x8xbf16>,
    %56 = tpu.concatenate %24, %51 in 1 : vector<8x16xf32>, vector<8x16xf32> -> vector<8x32xf32>
    %57 = arith.truncf %56 : vector<8x32xf32> to vector<8x32xbf16>
    %c0_31 = arith.constant 0 : index
    %c0_32 = arith.constant 0 : index
    %c0_33 = arith.constant 0 : index
    %58 = vector.load %arg3[%c0_31, %c0_32, %c0_33] : memref<1x8x32xbf16, #tpu.memory_space<vmem>>, vector<1x8x32xbf16>
    %59 = vector.shape_cast %58 : vector<1x8x32xbf16> to vector<8x32xbf16>
    %60 = vector.shape_cast %57 : vector<8x32xbf16> to vector<1x8x32xbf16>
    tpu.vector_store %arg3[%c0_31, %c0_32, %c0_33], %60 {strides = array<i32>} : memref<1x8x32xbf16, #tpu.memory_space<vmem>>, vector<1x8x32xbf16>,
    return
  }
  func.func @transform_0(%arg0: i32) -> (i32, i32, i32) {
    %c0_i32 = arith.constant 0 : i32
    %c0_i32_0 = arith.constant 0 : i32
    %c0_i32_1 = arith.constant 0 : i32
    return %arg0, %c0_i32, %c0_i32_0 : i32, i32, i32
  }
  func.func @transform_1(%arg0: i32) -> (i32, i32, i32) {
    %c0_i32 = arith.constant 0 : i32
    %c0_i32_0 = arith.constant 0 : i32
    %c0_i32_1 = arith.constant 0 : i32
    return %arg0, %c0_i32, %c0_i32_0 : i32, i32, i32
  }
  func.func @transform_2(%arg0: i32) -> (i32, i32, i32) {
    %c0_i32 = arith.constant 0 : i32
    %c0_i32_0 = arith.constant 0 : i32
    %c0_i32_1 = arith.constant 0 : i32
    return %arg0, %c0_i32, %c0_i32_0 : i32, i32, i32
  }
  func.func @transform_3(%arg0: i32) -> (i32, i32, i32, i32) {
    %c0_i32 = arith.constant 0 : i32
    %c0_i32_0 = arith.constant 0 : i32
    %c0_i32_1 = arith.constant 0 : i32
    %c0_i32_2 = arith.constant 0 : i32
    return %arg0, %c0_i32, %c0_i32_0, %c0_i32_1 : i32, i32, i32, i32
  }
}

module attributes {stable_mosaic.version = 11 : i64} {
  func.func @_matmul_ln_kernel(%arg0: i32, %arg1: i32, %arg2: memref<16x128xbf16, #tpu.memory_space<vmem>>, %arg3: memref<128x128xbf16, #tpu.memory_space<vmem>>, %arg4: memref<1x128xf32, #tpu.memory_space<vmem>>, %arg5: memref<16x128xbf16, #tpu.memory_space<vmem>>, %arg6: memref<1x128xf32, #tpu.memory_space<vmem>>, %arg7: memref<1x128xf32, #tpu.memory_space<vmem>>, %arg8: memref<16x128xbf16, #tpu.memory_space<vmem>>, %arg9: memref<16x128xf32, #tpu.memory_space<vmem>>) attributes {dimension_semantics = [#tpu.dimension_semantics<parallel>, #tpu.dimension_semantics<arbitrary>], iteration_bounds = array<i64: 1, 1>, scalar_prefetch = 0 : i64, scratch_operands = 1 : i64, tpu.core_type = #tpu.core_type<tc>, window_params = [{transform_indices = @transform_0, window_bounds = array<i64: 16, 128>}, {transform_indices = @transform_1, window_bounds = array<i64: 128, 128>}, {pipeline_mode = #tpu.pipeline_mode<synchronous>, transform_indices = @transform_2, window_bounds = array<i64: 1, 128>}, {transform_indices = @transform_3, window_bounds = array<i64: 16, 128>}, {pipeline_mode = #tpu.pipeline_mode<synchronous>, transform_indices = @transform_4, window_bounds = array<i64: 1, 128>}, {pipeline_mode = #tpu.pipeline_mode<synchronous>, transform_indices = @transform_5, window_bounds = array<i64: 1, 128>}, {transform_indices = @transform_6, window_bounds = array<i64: 16, 128>}]} {
    %c0_i32 = arith.constant 0 : i32
    %0 = arith.cmpi eq, %arg1, %c0_i32 : i32
    %1 = arith.extui %0 : i1 to i32
    %c0_i32_0 = arith.constant 0 : i32
    %2 = arith.cmpi ne, %1, %c0_i32_0 : i32
    scf.if %2 {
      %cst_10 = arith.constant 0.000000e+00 : f32
      %12 = vector.broadcast %cst_10 : f32 to vector<16x128xf32>
      %c0_11 = arith.constant 0 : index
      %c0_12 = arith.constant 0 : index
      %13 = vector.load %arg9[%c0_11, %c0_12] : memref<16x128xf32, #tpu.memory_space<vmem>>, vector<16x128xf32>
      tpu.vector_store %arg9[%c0_11, %c0_12], %12 {strides = array<i32>} : memref<16x128xf32, #tpu.memory_space<vmem>>, vector<16x128xf32>,
    } else {
    }
    %c0 = arith.constant 0 : index
    %c0_1 = arith.constant 0 : index
    %3 = vector.load %arg9[%c0, %c0_1] : memref<16x128xf32, #tpu.memory_space<vmem>>, vector<16x128xf32>
    %c0_2 = arith.constant 0 : index
    %c0_3 = arith.constant 0 : index
    %4 = vector.load %arg2[%c0_2, %c0_3] : memref<16x128xbf16, #tpu.memory_space<vmem>>, vector<16x128xbf16>
    %c0_4 = arith.constant 0 : index
    %c0_5 = arith.constant 0 : index
    %5 = vector.load %arg3[%c0_4, %c0_5] : memref<128x128xbf16, #tpu.memory_space<vmem>>, vector<128x128xbf16>
    %cst = arith.constant dense<0.000000e+00> : vector<16x128xf32>
    %6 = tpu.matmul %4, %5, %cst {dimension_numbers = #tpu.dot_dimension_numbers<[1], [0], [0], [1], [0, 0, 1, 1], [], []>} : vector<16x128xbf16>, vector<128x128xbf16>, vector<16x128xf32> -> vector<16x128xf32>
    %7 = arith.addf %3, %6 : vector<16x128xf32>
    %c0_6 = arith.constant 0 : index
    %c0_7 = arith.constant 0 : index
    %8 = vector.load %arg9[%c0_6, %c0_7] : memref<16x128xf32, #tpu.memory_space<vmem>>, vector<16x128xf32>
    tpu.vector_store %arg9[%c0_6, %c0_7], %7 {strides = array<i32>} : memref<16x128xf32, #tpu.memory_space<vmem>>, vector<16x128xf32>,
    %c0_i32_8 = arith.constant 0 : i32
    %9 = arith.cmpi eq, %arg1, %c0_i32_8 : i32
    %10 = arith.extui %9 : i1 to i32
    %c0_i32_9 = arith.constant 0 : i32
    %11 = arith.cmpi ne, %10, %c0_i32_9 : i32
    scf.if %11 {
      %c0_10 = arith.constant 0 : index
      %c0_11 = arith.constant 0 : index
      %12 = vector.load %arg9[%c0_10, %c0_11] : memref<16x128xf32, #tpu.memory_space<vmem>>, vector<16x128xf32>
      %c0_12 = arith.constant 0 : index
      %c0_13 = arith.constant 0 : index
      %13 = vector.load %arg4[%c0_12, %c0_13] : memref<1x128xf32, #tpu.memory_space<vmem>>, vector<1x128xf32>
      %14 = vector.broadcast %13 : vector<1x128xf32> to vector<16x128xf32>
      %15 = arith.addf %12, %14 : vector<16x128xf32>
      %c0_14 = arith.constant 0 : index
      %c0_15 = arith.constant 0 : index
      %16 = vector.load %arg5[%c0_14, %c0_15] : memref<16x128xbf16, #tpu.memory_space<vmem>>, vector<16x128xbf16>
      %17 = arith.extf %16 : vector<16x128xbf16> to vector<16x128xf32>
      %18 = arith.addf %15, %17 : vector<16x128xf32>
      %19 = tpu.iota {dimensions = array<i32: 1>} : vector<16x128xi32>
      %c32_i32 = arith.constant 32 : i32
      %20 = vector.broadcast %c32_i32 : i32 to vector<16x128xi32>
      %21 = arith.cmpi slt, %19, %20 : vector<16x128xi32>
      %cst_16 = arith.constant 0.000000e+00 : f32
      %22 = vector.broadcast %cst_16 : f32 to vector<16x128xf32>
      %23 = arith.select %21, %18, %22 : vector<16x128xi1>, vector<16x128xf32>
      %cst_17 = arith.constant dense<0.000000e+00> : vector<16xf32>
      %24 = vector.multi_reduction <add>, %23, %cst_17 [1] : vector<16x128xf32> to vector<16xf32>
      %25 = vector.shape_cast %24 : vector<16xf32> to vector<16x1xf32>
      %cst_18 = arith.constant 3.125000e-02 : f32
      %26 = vector.broadcast %cst_18 : f32 to vector<16x1xf32>
      %27 = arith.mulf %25, %26 : vector<16x1xf32>
      %28 = vector.broadcast %27 : vector<16x1xf32> to vector<16x128xf32>
      %29 = arith.subf %23, %28 : vector<16x128xf32>
      %cst_19 = arith.constant 0.000000e+00 : f32
      %30 = vector.broadcast %cst_19 : f32 to vector<16x128xf32>
      %31 = arith.select %21, %29, %30 : vector<16x128xi1>, vector<16x128xf32>
      %32 = arith.mulf %31, %31 : vector<16x128xf32>
      %cst_20 = arith.constant dense<0.000000e+00> : vector<16xf32>
      %33 = vector.multi_reduction <add>, %32, %cst_20 [1] : vector<16x128xf32> to vector<16xf32>
      %34 = vector.shape_cast %33 : vector<16xf32> to vector<16x1xf32>
      %cst_21 = arith.constant 3.125000e-02 : f32
      %35 = vector.broadcast %cst_21 : f32 to vector<16x1xf32>
      %36 = arith.mulf %34, %35 : vector<16x1xf32>
      %cst_22 = arith.constant 9.99999996E-13 : f32
      %37 = vector.broadcast %cst_22 : f32 to vector<16x1xf32>
      %38 = arith.addf %36, %37 : vector<16x1xf32>
      %39 = math.rsqrt %38 : vector<16x1xf32>
      %40 = vector.broadcast %39 : vector<16x1xf32> to vector<16x128xf32>
      %41 = arith.mulf %31, %40 : vector<16x128xf32>
      %c0_23 = arith.constant 0 : index
      %c0_24 = arith.constant 0 : index
      %42 = vector.load %arg6[%c0_23, %c0_24] : memref<1x128xf32, #tpu.memory_space<vmem>>, vector<1x128xf32>
      %43 = vector.broadcast %42 : vector<1x128xf32> to vector<16x128xf32>
      %44 = arith.mulf %41, %43 : vector<16x128xf32>
      %c0_25 = arith.constant 0 : index
      %c0_26 = arith.constant 0 : index
      %45 = vector.load %arg7[%c0_25, %c0_26] : memref<1x128xf32, #tpu.memory_space<vmem>>, vector<1x128xf32>
      %46 = vector.broadcast %45 : vector<1x128xf32> to vector<16x128xf32>
      %47 = arith.addf %44, %46 : vector<16x128xf32>
      %48 = arith.truncf %47 : vector<16x128xf32> to vector<16x128xbf16>
      %c0_27 = arith.constant 0 : index
      %c0_28 = arith.constant 0 : index
      %49 = vector.load %arg8[%c0_27, %c0_28] : memref<16x128xbf16, #tpu.memory_space<vmem>>, vector<16x128xbf16>
      tpu.vector_store %arg8[%c0_27, %c0_28], %48 {strides = array<i32>} : memref<16x128xbf16, #tpu.memory_space<vmem>>, vector<16x128xbf16>,
    } else {
    }
    return
  }
  func.func @transform_0(%arg0: i32, %arg1: i32) -> (i32, i32) {
    %c0_i32 = arith.constant 0 : i32
    return %arg0, %arg1 : i32, i32
  }
  func.func @transform_1(%arg0: i32, %arg1: i32) -> (i32, i32) {
    %c0_i32 = arith.constant 0 : i32
    %c0_i32_0 = arith.constant 0 : i32
    return %arg1, %c0_i32 : i32, i32
  }
  func.func @transform_2(%arg0: i32, %arg1: i32) -> (i32, i32) {
    %c0_i32 = arith.constant 0 : i32
    %c0_i32_0 = arith.constant 0 : i32
    %c0_i32_1 = arith.constant 0 : i32
    return %c0_i32, %c0_i32_0 : i32, i32
  }
  func.func @transform_3(%arg0: i32, %arg1: i32) -> (i32, i32) {
    %c0_i32 = arith.constant 0 : i32
    %c0_i32_0 = arith.constant 0 : i32
    return %arg0, %c0_i32 : i32, i32
  }
  func.func @transform_4(%arg0: i32, %arg1: i32) -> (i32, i32) {
    %c0_i32 = arith.constant 0 : i32
    %c0_i32_0 = arith.constant 0 : i32
    %c0_i32_1 = arith.constant 0 : i32
    return %c0_i32, %c0_i32_0 : i32, i32
  }
  func.func @transform_5(%arg0: i32, %arg1: i32) -> (i32, i32) {
    %c0_i32 = arith.constant 0 : i32
    %c0_i32_0 = arith.constant 0 : i32
    %c0_i32_1 = arith.constant 0 : i32
    return %c0_i32, %c0_i32_0 : i32, i32
  }
  func.func @transform_6(%arg0: i32, %arg1: i32) -> (i32, i32) {
    %c0_i32 = arith.constant 0 : i32
    %c0_i32_0 = arith.constant 0 : i32
    return %arg0, %c0_i32 : i32, i32
  }
}

module attributes {stable_mosaic.version = 11 : i64} {
  func.func @_matmul_kernel(%arg0: i32, %arg1: i32, %arg2: i32, %arg3: memref<16x128xbf16, #tpu.memory_space<vmem>>, %arg4: memref<128x128xbf16, #tpu.memory_space<vmem>>, %arg5: memref<1x128xf32, #tpu.memory_space<vmem>>, %arg6: memref<16x128xbf16, #tpu.memory_space<vmem>>, %arg7: memref<16x128xf32, #tpu.memory_space<vmem>>) attributes {dimension_semantics = [#tpu.dimension_semantics<parallel>, #tpu.dimension_semantics<parallel>, #tpu.dimension_semantics<arbitrary>], iteration_bounds = array<i64: 1, 1, 1>, scalar_prefetch = 0 : i64, scratch_operands = 1 : i64, tpu.core_type = #tpu.core_type<tc>, window_params = [{transform_indices = @transform_0, window_bounds = array<i64: 16, 128>}, {transform_indices = @transform_1, window_bounds = array<i64: 128, 128>}, {transform_indices = @transform_2, window_bounds = array<i64: 1, 128>}, {transform_indices = @transform_3, window_bounds = array<i64: 16, 128>}]} {
    %c0_i32 = arith.constant 0 : i32
    %0 = arith.cmpi eq, %arg2, %c0_i32 : i32
    %1 = arith.extui %0 : i1 to i32
    %c0_i32_0 = arith.constant 0 : i32
    %2 = arith.cmpi ne, %1, %c0_i32_0 : i32
    scf.if %2 {
      %cst_10 = arith.constant 0.000000e+00 : f32
      %12 = vector.broadcast %cst_10 : f32 to vector<16x128xf32>
      %c0_11 = arith.constant 0 : index
      %c0_12 = arith.constant 0 : index
      %13 = vector.load %arg7[%c0_11, %c0_12] : memref<16x128xf32, #tpu.memory_space<vmem>>, vector<16x128xf32>
      tpu.vector_store %arg7[%c0_11, %c0_12], %12 {strides = array<i32>} : memref<16x128xf32, #tpu.memory_space<vmem>>, vector<16x128xf32>,
    } else {
    }
    %c0 = arith.constant 0 : index
    %c0_1 = arith.constant 0 : index
    %3 = vector.load %arg7[%c0, %c0_1] : memref<16x128xf32, #tpu.memory_space<vmem>>, vector<16x128xf32>
    %c0_2 = arith.constant 0 : index
    %c0_3 = arith.constant 0 : index
    %4 = vector.load %arg3[%c0_2, %c0_3] : memref<16x128xbf16, #tpu.memory_space<vmem>>, vector<16x128xbf16>
    %c0_4 = arith.constant 0 : index
    %c0_5 = arith.constant 0 : index
    %5 = vector.load %arg4[%c0_4, %c0_5] : memref<128x128xbf16, #tpu.memory_space<vmem>>, vector<128x128xbf16>
    %cst = arith.constant dense<0.000000e+00> : vector<16x128xf32>
    %6 = tpu.matmul %4, %5, %cst {dimension_numbers = #tpu.dot_dimension_numbers<[1], [0], [0], [1], [0, 0, 1, 1], [], []>} : vector<16x128xbf16>, vector<128x128xbf16>, vector<16x128xf32> -> vector<16x128xf32>
    %7 = arith.addf %3, %6 : vector<16x128xf32>
    %c0_6 = arith.constant 0 : index
    %c0_7 = arith.constant 0 : index
    %8 = vector.load %arg7[%c0_6, %c0_7] : memref<16x128xf32, #tpu.memory_space<vmem>>, vector<16x128xf32>
    tpu.vector_store %arg7[%c0_6, %c0_7], %7 {strides = array<i32>} : memref<16x128xf32, #tpu.memory_space<vmem>>, vector<16x128xf32>,
    %c0_i32_8 = arith.constant 0 : i32
    %9 = arith.cmpi eq, %arg2, %c0_i32_8 : i32
    %10 = arith.extui %9 : i1 to i32
    %c0_i32_9 = arith.constant 0 : i32
    %11 = arith.cmpi ne, %10, %c0_i32_9 : i32
    scf.if %11 {
      %c0_10 = arith.constant 0 : index
      %c0_11 = arith.constant 0 : index
      %12 = vector.load %arg7[%c0_10, %c0_11] : memref<16x128xf32, #tpu.memory_space<vmem>>, vector<16x128xf32>
      %c0_12 = arith.constant 0 : index
      %c0_13 = arith.constant 0 : index
      %13 = vector.load %arg5[%c0_12, %c0_13] : memref<1x128xf32, #tpu.memory_space<vmem>>, vector<1x128xf32>
      %14 = vector.broadcast %13 : vector<1x128xf32> to vector<16x128xf32>
      %15 = arith.addf %12, %14 : vector<16x128xf32>
      %16 = arith.mulf %15, %15 : vector<16x128xf32>
      %17 = arith.mulf %15, %16 : vector<16x128xf32>
      %cst_14 = arith.constant 4.471500e-02 : f32
      %18 = vector.broadcast %cst_14 : f32 to vector<16x128xf32>
      %19 = arith.mulf %18, %17 : vector<16x128xf32>
      %20 = arith.addf %15, %19 : vector<16x128xf32>
      %cst_15 = arith.constant 0.797884583 : f32
      %21 = vector.broadcast %cst_15 : f32 to vector<16x128xf32>
      %22 = arith.mulf %21, %20 : vector<16x128xf32>
      %23 = math.tanh %22 : vector<16x128xf32>
      %cst_16 = arith.constant 1.000000e+00 : f32
      %24 = vector.broadcast %cst_16 : f32 to vector<16x128xf32>
      %25 = arith.addf %24, %23 : vector<16x128xf32>
      %cst_17 = arith.constant 5.000000e-01 : f32
      %26 = vector.broadcast %cst_17 : f32 to vector<16x128xf32>
      %27 = arith.mulf %26, %25 : vector<16x128xf32>
      %28 = arith.mulf %15, %27 : vector<16x128xf32>
      %29 = arith.truncf %28 : vector<16x128xf32> to vector<16x128xbf16>
      %c0_18 = arith.constant 0 : index
      %c0_19 = arith.constant 0 : index
      %30 = vector.load %arg6[%c0_18, %c0_19] : memref<16x128xbf16, #tpu.memory_space<vmem>>, vector<16x128xbf16>
      tpu.vector_store %arg6[%c0_18, %c0_19], %29 {strides = array<i32>} : memref<16x128xbf16, #tpu.memory_space<vmem>>, vector<16x128xbf16>,
    } else {
    }
    return
  }
  func.func @transform_0(%arg0: i32, %arg1: i32, %arg2: i32) -> (i32, i32) {
    %c0_i32 = arith.constant 0 : i32
    return %arg0, %arg2 : i32, i32
  }
  func.func @transform_1(%arg0: i32, %arg1: i32, %arg2: i32) -> (i32, i32) {
    %c0_i32 = arith.constant 0 : i32
    return %arg2, %arg1 : i32, i32
  }
  func.func @transform_2(%arg0: i32, %arg1: i32, %arg2: i32) -> (i32, i32) {
    %c0_i32 = arith.constant 0 : i32
    %c0_i32_0 = arith.constant 0 : i32
    return %c0_i32, %arg1 : i32, i32
  }
  func.func @transform_3(%arg0: i32, %arg1: i32, %arg2: i32) -> (i32, i32) {
    %c0_i32 = arith.constant 0 : i32
    return %arg0, %arg1 : i32, i32
  }
}

module attributes {stable_mosaic.version = 11 : i64} {
  func.func @_matmul_kernel(%arg0: i32, %arg1: i32, %arg2: i32, %arg3: memref<48x128xbf16, #tpu.memory_space<vmem>>, %arg4: memref<128x128xbf16, #tpu.memory_space<vmem>>, %arg5: memref<1x128xf32, #tpu.memory_space<vmem>>, %arg6: memref<48x128xf32, #tpu.memory_space<vmem>>, %arg7: memref<48x128xf32, #tpu.memory_space<vmem>>) attributes {dimension_semantics = [#tpu.dimension_semantics<parallel>, #tpu.dimension_semantics<parallel>, #tpu.dimension_semantics<arbitrary>], iteration_bounds = array<i64: 1, 1, 1>, scalar_prefetch = 0 : i64, scratch_operands = 1 : i64, tpu.core_type = #tpu.core_type<tc>, window_params = [{transform_indices = @transform_0, window_bounds = array<i64: 48, 128>}, {transform_indices = @transform_1, window_bounds = array<i64: 128, 128>}, {transform_indices = @transform_2, window_bounds = array<i64: 1, 128>}, {transform_indices = @transform_3, window_bounds = array<i64: 48, 128>}]} {
    %c0_i32 = arith.constant 0 : i32
    %0 = arith.cmpi eq, %arg2, %c0_i32 : i32
    %1 = arith.extui %0 : i1 to i32
    %c0_i32_0 = arith.constant 0 : i32
    %2 = arith.cmpi ne, %1, %c0_i32_0 : i32
    scf.if %2 {
      %cst_10 = arith.constant 0.000000e+00 : f32
      %12 = vector.broadcast %cst_10 : f32 to vector<48x128xf32>
      %c0_11 = arith.constant 0 : index
      %c0_12 = arith.constant 0 : index
      %13 = vector.load %arg7[%c0_11, %c0_12] : memref<48x128xf32, #tpu.memory_space<vmem>>, vector<48x128xf32>
      tpu.vector_store %arg7[%c0_11, %c0_12], %12 {strides = array<i32>} : memref<48x128xf32, #tpu.memory_space<vmem>>, vector<48x128xf32>,
    } else {
    }
    %c0 = arith.constant 0 : index
    %c0_1 = arith.constant 0 : index
    %3 = vector.load %arg7[%c0, %c0_1] : memref<48x128xf32, #tpu.memory_space<vmem>>, vector<48x128xf32>
    %c0_2 = arith.constant 0 : index
    %c0_3 = arith.constant 0 : index
    %4 = vector.load %arg3[%c0_2, %c0_3] : memref<48x128xbf16, #tpu.memory_space<vmem>>, vector<48x128xbf16>
    %c0_4 = arith.constant 0 : index
    %c0_5 = arith.constant 0 : index
    %5 = vector.load %arg4[%c0_4, %c0_5] : memref<128x128xbf16, #tpu.memory_space<vmem>>, vector<128x128xbf16>
    %cst = arith.constant dense<0.000000e+00> : vector<48x128xf32>
    %6 = tpu.matmul %4, %5, %cst {dimension_numbers = #tpu.dot_dimension_numbers<[1], [0], [0], [1], [0, 0, 1, 1], [], []>} : vector<48x128xbf16>, vector<128x128xbf16>, vector<48x128xf32> -> vector<48x128xf32>
    %7 = arith.addf %3, %6 : vector<48x128xf32>
    %c0_6 = arith.constant 0 : index
    %c0_7 = arith.constant 0 : index
    %8 = vector.load %arg7[%c0_6, %c0_7] : memref<48x128xf32, #tpu.memory_space<vmem>>, vector<48x128xf32>
    tpu.vector_store %arg7[%c0_6, %c0_7], %7 {strides = array<i32>} : memref<48x128xf32, #tpu.memory_space<vmem>>, vector<48x128xf32>,
    %c0_i32_8 = arith.constant 0 : i32
    %9 = arith.cmpi eq, %arg2, %c0_i32_8 : i32
    %10 = arith.extui %9 : i1 to i32
    %c0_i32_9 = arith.constant 0 : i32
    %11 = arith.cmpi ne, %10, %c0_i32_9 : i32
    scf.if %11 {
      %c0_10 = arith.constant 0 : index
      %c0_11 = arith.constant 0 : index
      %12 = vector.load %arg7[%c0_10, %c0_11] : memref<48x128xf32, #tpu.memory_space<vmem>>, vector<48x128xf32>
      %c0_12 = arith.constant 0 : index
      %c0_13 = arith.constant 0 : index
      %13 = vector.load %arg5[%c0_12, %c0_13] : memref<1x128xf32, #tpu.memory_space<vmem>>, vector<1x128xf32>
      %14 = vector.broadcast %13 : vector<1x128xf32> to vector<48x128xf32>
      %15 = arith.addf %12, %14 : vector<48x128xf32>
      %c0_14 = arith.constant 0 : index
      %c0_15 = arith.constant 0 : index
      %16 = vector.load %arg6[%c0_14, %c0_15] : memref<48x128xf32, #tpu.memory_space<vmem>>, vector<48x128xf32>
      tpu.vector_store %arg6[%c0_14, %c0_15], %15 {strides = array<i32>} : memref<48x128xf32, #tpu.memory_space<vmem>>, vector<48x128xf32>,
    } else {
    }
    return
  }
  func.func @transform_0(%arg0: i32, %arg1: i32, %arg2: i32) -> (i32, i32) {
    %c0_i32 = arith.constant 0 : i32
    return %arg0, %arg2 : i32, i32
  }
  func.func @transform_1(%arg0: i32, %arg1: i32, %arg2: i32) -> (i32, i32) {
    %c0_i32 = arith.constant 0 : i32
    return %arg2, %arg1 : i32, i32
  }
  func.func @transform_2(%arg0: i32, %arg1: i32, %arg2: i32) -> (i32, i32) {
    %c0_i32 = arith.constant 0 : i32
    %c0_i32_0 = arith.constant 0 : i32
    return %c0_i32, %arg1 : i32, i32
  }
  func.func @transform_3(%arg0: i32, %arg1: i32, %arg2: i32) -> (i32, i32) {
    %c0_i32 = arith.constant 0 : i32
    return %arg0, %arg1 : i32, i32
  }
}

</mosaic_0001>

<llo_original>
// kernel: model_forward.11
$region0: #{model_forward.11}
  #allocation0 [shape = 'u32[]', space=smem, size = 0x4, offset = 0x4, fixed_abs, tag = 'smem constant byte address 0x4 - core index']
  #allocation1 [shape = 'u32[72,128]{1,0:T(1,128)}', space=vmem, size = 0x9000, scoped, tag = 'internal scratch']
  #allocation2 [shape = 'f32[16,128]{1,0:T(8,128)}', space=vmem, size = 0x2000, scoped, tag = 'scratch operand']
  %s0 = inlined_call_operand.vmem [shape: bf16[16,128], index: 0, kind: input, shape index: {}]
  %s1 = inlined_call_operand.vmem [shape: bf16[128,128], index: 1, kind: input, shape index: {}]
  %s2 = inlined_call_operand.vmem [shape: f32[1,128], index: 2, kind: input, shape index: {}]
  %s3 = inlined_call_operand.vmem [shape: bf16[16,128], index: 3, kind: output, shape index: {}]
  %s4 = sld [smem:[#allocation0]]
  $region30: #{model_forward.11} parent=0
    _
  %s6 = ssub.s32 1, %s4
  %s7 = scalar_select 0, %s6, %s4
  // Predicated region
  $region2: #{model_forward.11} parent=0 // pred_check
    _
  $region3: #{model_forward.11} parent=0 // pred_check_branch
    %9 = sbr.rel (0) target = $region5
  $region4: #{model_forward.11} parent=0 // pred_region
    _
  $region5: #{model_forward.11} parent=0 // pred_fallthru
    _
  // Predicated region
  $region6: #{model_forward.11} parent=0 // pred_check
    _
  $region7: #{model_forward.11} parent=0 // pred_check_branch
    %11 = sbr.rel (0) target = $region9
  $region8: #{model_forward.11} parent=0 // pred_region
    _
  $region9: #{model_forward.11} parent=0 // pred_fallthru
    _
  // Predicated region
  $region10: #{model_forward.11} parent=0 // pred_check
    _
  $region11: #{model_forward.11} parent=0 // pred_check_branch
    %13 = sbr.rel (0) target = $region13
  $region12: #{model_forward.11} parent=0 // pred_region
    _
  $region13: #{model_forward.11} parent=0 // pred_fallthru
    _
  %p14 = scmp.eq.s32.totalorder 0, 0
  // Predicated region
  $region14: #{model_forward.11} parent=0 // pred_check
    %p15 = pneg %p14
  $region15: #{model_forward.11} parent=0 // pred_check_branch
    %17 = sbr.rel (%p15) target = $region17
  $region16: #{model_forward.11} parent=0 // pred_region
    %18 = vst [vmem:[#allocation2] sm:$0xff] 0.0
    %19 = vst [vmem:[#allocation2 + $0x8] sm:$0xff] 0.0
  $region17: #{model_forward.11} parent=0 // pred_fallthru
    _
  %v20 = vld [vmem:[#allocation2] sm:$0xff]
  %v21 = vld [vmem:[#allocation2 + $0x8] sm:$0xff]
  %v22 = vld [vmem:[%s0] sm:$0xf]
  %v23 = vld [vmem:[%s0 + $0x4] sm:$0xf]
  %v24 = vld [vmem:[%s1] sm:$0xf]
  %v25 = vld [vmem:[%s1 + $0x4] sm:$0xf]
  %v26 = vld [vmem:[%s1 + $0x8] sm:$0xf]
  %v27 = vld [vmem:[%s1 + $0xc] sm:$0xf]
  %v28 = vld [vmem:[%s1 + $0x10] sm:$0xf]
  %v29 = vld [vmem:[%s1 + $0x14] sm:$0xf]
  %v30 = vld [vmem:[%s1 + $0x18] sm:$0xf]
  %v31 = vld [vmem:[%s1 + $0x1c] sm:$0xf]
  %v32 = vld [vmem:[%s1 + $0x20] sm:$0xf]
  %v33 = vld [vmem:[%s1 + $0x24] sm:$0xf]
  %v34 = vld [vmem:[%s1 + $0x28] sm:$0xf]
  %v35 = vld [vmem:[%s1 + $0x2c] sm:$0xf]
  %v36 = vld [vmem:[%s1 + $0x30] sm:$0xf]
  %v37 = vld [vmem:[%s1 + $0x34] sm:$0xf]
  %v38 = vld [vmem:[%s1 + $0x38] sm:$0xf]
  %v39 = vld [vmem:[%s1 + $0x3c] sm:$0xf]
  %v42 = vunpack.c.l.b16 %v22
  %v43 = vunpack.c.l.b16 %v23
  %v44 = vpack.c.b16 %v43, %v42
  %v62 = vunpack.c.l.b16 %v24
  %v63 = vunpack.c.l.b16 %v25
  %v64 = vunpack.c.l.b16 %v26
  %v65 = vunpack.c.l.b16 %v27
  %v66 = vunpack.c.l.b16 %v28
  %v67 = vunpack.c.l.b16 %v29
  %v68 = vunpack.c.l.b16 %v30
  %v69 = vunpack.c.l.b16 %v31
  %v70 = vunpack.c.l.b16 %v32
  %v71 = vunpack.c.l.b16 %v33
  %v72 = vunpack.c.l.b16 %v34
  %v73 = vunpack.c.l.b16 %v35
  %v74 = vunpack.c.l.b16 %v36
  %v75 = vunpack.c.l.b16 %v37
  %v76 = vunpack.c.l.b16 %v38
  %v77 = vunpack.c.l.b16 %v39
  %v78 = vpack.c.b16 %v63, %v62
  %v79 = vpack.c.b16 %v65, %v64
  %v80 = vpack.c.b16 %v67, %v66
  %v81 = vpack.c.b16 %v69, %v68
  %v82 = vpack.c.b16 %v71, %v70
  %v83 = vpack.c.b16 %v73, %v72
  %v84 = vpack.c.b16 %v75, %v74
  %v85 = vpack.c.b16 %v77, %v76
  %94 = vmatpush.bf16.msra.mxu0 %v85
  %95 = vmatpush.bf16.msra.mxu0 %v84
  %96 = vmatpush.bf16.msra.mxu0 %v83
  %97 = vmatpush.bf16.msra.mxu0 %v82
  %98 = vmatpush.bf16.msra.mxu0 %v81
  %99 = vmatpush.bf16.msra.mxu0 %v80
  %100 = vmatpush.bf16.msra.mxu0 %v79
  %101 = vmatpush.bf16.msra.mxu0 %v78
  %102 = vmatmul.bf16.gmra.mxu0 %v44
  %v103 = vpop.f32.mrf.mxu0
  %v104 = vadd.f32 0.0, %v103
  %v105 = vpop.f32.mrf.mxu0
  %v106 = vadd.f32 0.0, %v105
  %107 = vdwg.mxu0
  %v108 = vadd.f32 %v20, %v104
  %v109 = vadd.f32 %v21, %v106
  %110 = vst [vmem:[#allocation2] sm:$0xff] %v108
  %111 = vst [vmem:[#allocation2 + $0x8] sm:$0xff] %v109
  // Predicated region
  $region18: #{model_forward.11} parent=0 // pred_check
    %p112 = pneg %p14
  $region19: #{model_forward.11} parent=0 // pred_check_branch
    %114 = sbr.rel (%p112) target = $region21
  $region20: #{model_forward.11} parent=0 // pred_region
    %v115 = vld [vmem:[#allocation2] sm:$0xff]
    %v116 = vld [vmem:[#allocation2 + $0x8] sm:$0xff]
    %v117 = vld [vmem:[%s2] sm:$0x1]
    %v119 = vperm.slane %v117, 0
    %v121 = vadd.f32 %v115, %v119
    %v122 = vadd.f32 %v116, %v119
    %v123 = vpack.c.bf16 %v121, %v121
    %v124 = vpack.c.bf16 %v122, %v122
    %125 = vst [vmem:[%s3] sm:$0xf] %v123
    %126 = vst [vmem:[%s3 + $0x4] sm:$0xf] %v124
  $region21: #{model_forward.11} parent=0 // pred_fallthru
    _
  // Predicated region
  $region22: #{model_forward.11} parent=0 // pred_check
    _
  $region23: #{model_forward.11} parent=0 // pred_check_branch
    %128 = sbr.rel (0) target = $region25
  $region24: #{model_forward.11} parent=0 // pred_region
    _
  $region25: #{model_forward.11} parent=0 // pred_fallthru
    _
  // Predicated region
  $region26: #{model_forward.11} parent=0 // pred_check
    _
  $region27: #{model_forward.11} parent=0 // pred_check_branch
    %130 = sbr.rel (0) target = $region29
  $region28: #{model_forward.11} parent=0 // pred_region
    _
  $region29: #{model_forward.11} parent=0 // pred_fallthru
    _

// kernel: model_forward.13
$region0: #{model_forward.13}
  #allocation0 [shape = 'u32[]', space=smem, size = 0x4, offset = 0x4, fixed_abs, tag = 'smem constant byte address 0x4 - core index']
  #allocation1 [shape = 'u32[72,128]{1,0:T(1,128)}', space=vmem, size = 0x9000, scoped, tag = 'internal scratch']
  #allocation2 [shape = 'f32[16,128]{1,0:T(8,128)}', space=vmem, size = 0x2000, scoped, tag = 'scratch operand']
  %s0 = inlined_call_operand.vmem [shape: bf16[16,128], index: 0, kind: input, shape index: {}]
  %s1 = inlined_call_operand.vmem [shape: bf16[128,128], index: 1, kind: input, shape index: {}]
  %s2 = inlined_call_operand.vmem [shape: f32[1,128], index: 2, kind: input, shape index: {}]
  %s3 = inlined_call_operand.vmem [shape: bf16[16,128], index: 3, kind: input, shape index: {}]
  %s4 = inlined_call_operand.vmem [shape: f32[1,128], index: 4, kind: input, shape index: {}]
  %s5 = inlined_call_operand.vmem [shape: f32[1,128], index: 5, kind: input, shape index: {}]
  %s6 = inlined_call_operand.vmem [shape: bf16[16,128], index: 6, kind: output, shape index: {}]
  %s7 = sld [smem:[#allocation0]]
  $region42: #{model_forward.13} parent=0
    _
  %s9 = ssub.s32 1, %s7
  %s10 = scalar_select 0, %s9, %s7
  // Predicated region
  $region2: #{model_forward.13} parent=0 // pred_check
    _
  $region3: #{model_forward.13} parent=0 // pred_check_branch
    %12 = sbr.rel (0) target = $region5
  $region4: #{model_forward.13} parent=0 // pred_region
    _
  $region5: #{model_forward.13} parent=0 // pred_fallthru
    _
  // Predicated region
  $region6: #{model_forward.13} parent=0 // pred_check
    _
  $region7: #{model_forward.13} parent=0 // pred_check_branch
    %14 = sbr.rel (0) target = $region9
  $region8: #{model_forward.13} parent=0 // pred_region
    _
  $region9: #{model_forward.13} parent=0 // pred_fallthru
    _
  // Predicated region
  $region10: #{model_forward.13} parent=0 // pred_check
    _
  $region11: #{model_forward.13} parent=0 // pred_check_branch
    %16 = sbr.rel (0) target = $region13
  $region12: #{model_forward.13} parent=0 // pred_region
    _
  $region13: #{model_forward.13} parent=0 // pred_fallthru
    _
  // Predicated region
  $region14: #{model_forward.13} parent=0 // pred_check
    _
  $region15: #{model_forward.13} parent=0 // pred_check_branch
    %18 = sbr.rel (0) target = $region17
  $region16: #{model_forward.13} parent=0 // pred_region
    _
  $region17: #{model_forward.13} parent=0 // pred_fallthru
    _
  // Predicated region
  $region18: #{model_forward.13} parent=0 // pred_check
    _
  $region19: #{model_forward.13} parent=0 // pred_check_branch
    %20 = sbr.rel (0) target = $region21
  $region20: #{model_forward.13} parent=0 // pred_region
    _
  $region21: #{model_forward.13} parent=0 // pred_fallthru
    _
  // Predicated region
  $region22: #{model_forward.13} parent=0 // pred_check
    _
  $region23: #{model_forward.13} parent=0 // pred_check_branch
    %22 = sbr.rel (0) target = $region25
  $region24: #{model_forward.13} parent=0 // pred_region
    _
  $region25: #{model_forward.13} parent=0 // pred_fallthru
    _
  %p23 = scmp.eq.s32.totalorder 0, 0
  // Predicated region
  $region26: #{model_forward.13} parent=0 // pred_check
    %p24 = pneg %p23
  $region27: #{model_forward.13} parent=0 // pred_check_branch
    %26 = sbr.rel (%p24) target = $region29
  $region28: #{model_forward.13} parent=0 // pred_region
    %27 = vst [vmem:[#allocation2] sm:$0xff] 0.0
    %28 = vst [vmem:[#allocation2 + $0x8] sm:$0xff] 0.0
  $region29: #{model_forward.13} parent=0 // pred_fallthru
    _
  %v29 = vld [vmem:[#allocation2] sm:$0xff]
  %v30 = vld [vmem:[#allocation2 + $0x8] sm:$0xff]
  %v31 = vld [vmem:[%s0] sm:$0xf]
  %v32 = vld [vmem:[%s0 + $0x4] sm:$0xf]
  %v33 = vld [vmem:[%s1] sm:$0xf]
  %v34 = vld [vmem:[%s1 + $0x4] sm:$0xf]
  %v35 = vld [vmem:[%s1 + $0x8] sm:$0xf]
  %v36 = vld [vmem:[%s1 + $0xc] sm:$0xf]
  %v37 = vld [vmem:[%s1 + $0x10] sm:$0xf]
  %v38 = vld [vmem:[%s1 + $0x14] sm:$0xf]
  %v39 = vld [vmem:[%s1 + $0x18] sm:$0xf]
  %v40 = vld [vmem:[%s1 + $0x1c] sm:$0xf]
  %v41 = vld [vmem:[%s1 + $0x20] sm:$0xf]
  %v42 = vld [vmem:[%s1 + $0x24] sm:$0xf]
  %v43 = vld [vmem:[%s1 + $0x28] sm:$0xf]
  %v44 = vld [vmem:[%s1 + $0x2c] sm:$0xf]
  %v45 = vld [vmem:[%s1 + $0x30] sm:$0xf]
  %v46 = vld [vmem:[%s1 + $0x34] sm:$0xf]
  %v47 = vld [vmem:[%s1 + $0x38] sm:$0xf]
  %v48 = vld [vmem:[%s1 + $0x3c] sm:$0xf]
  %v51 = vunpack.c.l.b16 %v31
  %v52 = vunpack.c.l.b16 %v32
  %v53 = vpack.c.b16 %v52, %v51
  %v71 = vunpack.c.l.b16 %v33
  %v72 = vunpack.c.l.b16 %v34
  %v73 = vunpack.c.l.b16 %v35
  %v74 = vunpack.c.l.b16 %v36
  %v75 = vunpack.c.l.b16 %v37
  %v76 = vunpack.c.l.b16 %v38
  %v77 = vunpack.c.l.b16 %v39
  %v78 = vunpack.c.l.b16 %v40
  %v79 = vunpack.c.l.b16 %v41
  %v80 = vunpack.c.l.b16 %v42
  %v81 = vunpack.c.l.b16 %v43
  %v82 = vunpack.c.l.b16 %v44
  %v83 = vunpack.c.l.b16 %v45
  %v84 = vunpack.c.l.b16 %v46
  %v85 = vunpack.c.l.b16 %v47
  %v86 = vunpack.c.l.b16 %v48
  %v87 = vpack.c.b16 %v72, %v71
  %v88 = vpack.c.b16 %v74, %v73
  %v89 = vpack.c.b16 %v76, %v75
  %v90 = vpack.c.b16 %v78, %v77
  %v91 = vpack.c.b16 %v80, %v79
  %v92 = vpack.c.b16 %v82, %v81
  %v93 = vpack.c.b16 %v84, %v83
  %v94 = vpack.c.b16 %v86, %v85
  %103 = vmatpush.bf16.msra.mxu0 %v94
  %104 = vmatpush.bf16.msra.mxu0 %v93
  %105 = vmatpush.bf16.msra.mxu0 %v92
  %106 = vmatpush.bf16.msra.mxu0 %v91
  %107 = vmatpush.bf16.msra.mxu0 %v90
  %108 = vmatpush.bf16.msra.mxu0 %v89
  %109 = vmatpush.bf16.msra.mxu0 %v88
  %110 = vmatpush.bf16.msra.mxu0 %v87
  %111 = vmatmul.bf16.gmra.mxu0 %v53
  %v112 = vpop.f32.mrf.mxu0
  %v113 = vadd.f32 0.0, %v112
  %v114 = vpop.f32.mrf.mxu0
  %v115 = vadd.f32 0.0, %v114
  %116 = vdwg.mxu0
  %v117 = vadd.f32 %v29, %v113
  %v118 = vadd.f32 %v30, %v115
  %119 = vst [vmem:[#allocation2] sm:$0xff] %v117
  %120 = vst [vmem:[#allocation2 + $0x8] sm:$0xff] %v118
  // Predicated region
  $region30: #{model_forward.13} parent=0 // pred_check
    %p121 = pneg %p23
  $region31: #{model_forward.13} parent=0 // pred_check_branch
    %123 = sbr.rel (%p121) target = $region33
  $region32: #{model_forward.13} parent=0 // pred_region
    %v124 = vld [vmem:[#allocation2] sm:$0xff]
    %v125 = vld [vmem:[#allocation2 + $0x8] sm:$0xff]
    %v126 = vld [vmem:[%s2] sm:$0x1]
    %v128 = vperm.slane %v126, 0
    %v130 = vadd.f32 %v124, %v128
    %v131 = vadd.f32 %v125, %v128
    %v132 = vld [vmem:[%s3] sm:$0xf]
    %v133 = vld [vmem:[%s3 + $0x4] sm:$0xf]
    %v134 = vunpack.c.l.bf16 %v132
    %v135 = vunpack.c.l.bf16 %v133
    %v136 = vadd.f32 %v130, %v134
    %v137 = vadd.f32 %v131, %v135
    %v138 = vlaneseq
    %v139 = vand.u32 %v138, 127
    %vm140 = vcmp.lt.s32.totalorder %v139, 32
    %v141 = vsel %vm140, %v136, 0.0
    %v142 = vsel %vm140, %v137, 0.0
    %143 = vadd.xlane.f32.xlu0 %v141
    %v144 = vpop.xlane.xlu0 %143
    %145 = vadd.xlane.f32.xlu0 %v142
    %v146 = vpop.xlane.xlu0 %145
    %v147 = vmul.f32 %v144, 0.03125
    %v148 = vmul.f32 %v146, 0.03125
    %v149 = vsub.f32 %v141, %v147
    %v150 = vsub.f32 %v142, %v148
    %v151 = vsel %vm140, %v149, 0.0
    %v152 = vsel %vm140, %v150, 0.0
    %v153 = vmul.f32 %v151, %v151
    %v154 = vmul.f32 %v152, %v152
    %155 = vadd.xlane.f32.xlu0 %v153
    %v156 = vpop.xlane.xlu0 %155
    %157 = vadd.xlane.f32.xlu0 %v154
    %v158 = vpop.xlane.xlu0 %157
    %v159 = vmul.f32 %v156, 0.03125
    %v160 = vmul.f32 %v158, 0.03125
    %v161 = vadd.f32 %v159, 1e-12
    %v162 = vadd.f32 %v160, 1e-12
    %v163 = vrsqrt.pop %v161
    %v164 = vmul.f32 %v163, %v161
    %v165 = vmul.f32 %v164, %v163
    %v166 = vmul.f32 0.5, %v165
    %v167 = vsub.f32 1.5, %v166
    %v168 = vmul.f32 %v163, %v167
    %vm169 = vweird.f32 %v161
    %vm170 = vweird.f32 %v163
    %vm171 = vmor %vm169, %vm170
    %v172 = vsel %vm171, %v163, %v168
    %v173 = vrsqrt.pop %v162
    %v174 = vmul.f32 %v173, %v162
    %v175 = vmul.f32 %v174, %v173
    %v176 = vmul.f32 0.5, %v175
    %v177 = vsub.f32 1.5, %v176
    %v178 = vmul.f32 %v173, %v177
    %vm179 = vweird.f32 %v162
    %vm180 = vweird.f32 %v173
    %vm181 = vmor %vm179, %vm180
    %v182 = vsel %vm181, %v173, %v178
    %v183 = vmul.f32 %v151, %v172
    %v184 = vmul.f32 %v152, %v182
    %v185 = vld [vmem:[%s4] sm:$0x1]
    %v187 = vperm.slane %v185, 0
    %v189 = vmul.f32 %v183, %v187
    %v190 = vmul.f32 %v184, %v187
    %v191 = vld [vmem:[%s5] sm:$0x1]
    %v193 = vperm.slane %v191, 0
    %v195 = vadd.f32 %v189, %v193
    %v196 = vadd.f32 %v190, %v193
    %v197 = vpack.c.bf16 %v195, %v195
    %v198 = vpack.c.bf16 %v196, %v196
    %199 = vst [vmem:[%s6] sm:$0xf] %v197
    %200 = vst [vmem:[%s6 + $0x4] sm:$0xf] %v198
  $region33: #{model_forward.13} parent=0 // pred_fallthru
    _
  // Predicated region
  $region34: #{model_forward.13} parent=0 // pred_check
    _
  $region35: #{model_forward.13} parent=0 // pred_check_branch
    %202 = sbr.rel (0) target = $region37
  $region36: #{model_forward.13} parent=0 // pred_region
    _
  $region37: #{model_forward.13} parent=0 // pred_fallthru
    _
  // Predicated region
  $region38: #{model_forward.13} parent=0 // pred_check
    _
  $region39: #{model_forward.13} parent=0 // pred_check_branch
    %204 = sbr.rel (0) target = $region41
  $region40: #{model_forward.13} parent=0 // pred_region
    _
  $region41: #{model_forward.13} parent=0 // pred_fallthru
    _

// kernel: model_forward.12
$region0: #{model_forward.12}
  #allocation0 [shape = 'u32[]', space=smem, size = 0x4, offset = 0x4, fixed_abs, tag = 'smem constant byte address 0x4 - core index']
  #allocation1 [shape = 'u32[72,128]{1,0:T(1,128)}', space=vmem, size = 0x9000, scoped, tag = 'internal scratch']
  %s0 = inlined_call_operand.vmem [shape: bf16[2,8,96], index: 0, kind: input, shape index: {}]
  %s1 = inlined_call_operand.vmem [shape: f32[2,1,8], index: 1, kind: input, shape index: {}]
  %s2 = inlined_call_operand.vmem [shape: bf16[2,8,32], index: 2, kind: output, shape index: {0}]
  %s3 = inlined_call_operand.hbm [shape: bf16[2,2,8,8], index: 3, kind: output, shape index: {1}]
  %4 = xla_tuple %s2, %s3
  %s5 = sld [smem:[#allocation0]]
  $region49: #{model_forward.12} parent=0
    _
  %s7 = ssub.s32 1, %s5
  %s8 = scalar_select 0, %s7, %s5
  $region1: #{model_forward.12} parent=0
    #allocation2 [shape = 'u8[8192]{0}', space=vmem, size = 0x2000, scoped, tag = 'output window, operand 1']
    #allocation3 [shape = 's32[2]{0}', space=sflag, size = 0x8, scoped, tag = 'scoped memory for model_forward.12']
    %9 = vsyncpa [#allocation3], 0
    %s10 = scalar_lea.sflag [#allocation3], 1
    %11 = vsyncpa %s10, 0
    loop: start=0, step=1, limit=4
    $region2: #{model_forward.12} parent=1 // loop_pre_header
      _
    $region3: #{model_forward.12} parent=1 // loop_header
      %s13 = sphi 0, %s17
      %p14 = scmp.ge.s32.totalorder %s13, 4
      %s23 = sphi 0, %s25
      %s26 = sphi 0, %s23
      %s27 = sphi 0, %s26
      %s43 = sphi 0, %s27
      %s49 = sphi 0, %s51
      %s52 = sphi 0, %s49
      %s53 = sphi 0, %s52
      %s69 = sphi 0, %s53
      %s75 = sphi 0, %s77
      %s78 = sphi 0, %s75
      %s79 = sphi 0, %s78
      %s95 = sphi 0, %s79
      %s101 = sphi 0, %s103
      %s104 = sphi 0, %s101
      %s105 = sphi 0, %s104
      %s121 = sphi 0, %s105
    $region4: #{model_forward.12} parent=1 // loop_header_branch
      %16 = sbr.rel (%p14) target = $region8
    $region5: #{model_forward.12} parent=1 // loop_body
      %s18 = ssub.s32 %s13, 1
      %s19 = ssub.s32 %s13, 2
      %s20 = sadd.s32 %s13, 1
      %s21 = ssub.s32 %s13, %s20
      %p22 = scmp.eq.s32.totalorder %s21, 0
      %s24 = sadd.s32 %s23, 1
      %s25 = scalar_select %p22, %s23, %s24
      %p28 = pneg %p22
      %p29 = scmp.eq.s32.totalorder %s13, 1
      %p30 = por %p28, %p29
      %p31 = scmp.ne.s32.totalorder %s23, %s26
      %p32 = scmp.eq.s32.totalorder %s13, 0
      %p33 = por %p31, %p32
      %p34 = scmp.ne.s32.totalorder %s23, %s26
      %p35 = scmp.eq.s32.totalorder %s18, 1
      %p36 = por %p34, %p35
      %p37 = scmp.ne.s32.totalorder %s26, %s27
      %p38 = scmp.eq.s32.totalorder %s18, 0
      %p39 = por %p37, %p38
      %p40 = scmp.ne.s32.totalorder %s26, %s27
      %p41 = scmp.eq.s32.totalorder %s19, 1
      %p42 = por %p40, %p41
      %p44 = scmp.ne.s32.totalorder %s27, %s43
      %p45 = scmp.eq.s32.totalorder %s19, 0
      %p46 = por %p44, %p45
      %s47 = ssub.s32 %s13, %s20
      %p48 = scmp.eq.s32.totalorder %s47, 0
      %s50 = sadd.s32 %s49, 1
      %s51 = scalar_select %p48, %s49, %s50
      %p54 = pneg %p48
      %p55 = scmp.eq.s32.totalorder %s13, 1
      %p56 = por %p54, %p55
      %p57 = scmp.ne.s32.totalorder %s49, %s52
      %p58 = scmp.eq.s32.totalorder %s13, 0
      %p59 = por %p57, %p58
      %p60 = scmp.ne.s32.totalorder %s49, %s52
      %p61 = scmp.eq.s32.totalorder %s18, 1
      %p62 = por %p60, %p61
      %p63 = scmp.ne.s32.totalorder %s52, %s53
      %p64 = scmp.eq.s32.totalorder %s18, 0
      %p65 = por %p63, %p64
      %p66 = scmp.ne.s32.totalorder %s52, %s53
      %p67 = scmp.eq.s32.totalorder %s19, 1
      %p68 = por %p66, %p67
      %p70 = scmp.ne.s32.totalorder %s53, %s69
      %p71 = scmp.eq.s32.totalorder %s19, 0
      %p72 = por %p70, %p71
      %s73 = ssub.s32 %s13, %s20
      %p74 = scmp.eq.s32.totalorder %s73, 0
      %s76 = sadd.s32 %s75, 1
      %s77 = scalar_select %p74, %s75, %s76
      %p80 = pneg %p74
      %p81 = scmp.eq.s32.totalorder %s13, 1
      %p82 = por %p80, %p81
      %p83 = scmp.ne.s32.totalorder %s75, %s78
      %p84 = scmp.eq.s32.totalorder %s13, 0
      %p85 = por %p83, %p84
      %p86 = scmp.ne.s32.totalorder %s75, %s78
      %p87 = scmp.eq.s32.totalorder %s18, 1
      %p88 = por %p86, %p87
      %p89 = scmp.ne.s32.totalorder %s78, %s79
      %p90 = scmp.eq.s32.totalorder %s18, 0
      %p91 = por %p89, %p90
      %p92 = scmp.ne.s32.totalorder %s78, %s79
      %p93 = scmp.eq.s32.totalorder %s19, 1
      %p94 = por %p92, %p93
      %p96 = scmp.ne.s32.totalorder %s79, %s95
      %p97 = scmp.eq.s32.totalorder %s19, 0
      %p98 = por %p96, %p97
      %s99 = ssub.s32 %s13, %s20
      %p100 = scmp.eq.s32.totalorder %s99, 0
      %s102 = sadd.s32 %s101, 1
      %s103 = scalar_select %p100, %s101, %s102
      %p106 = pneg %p100
      %p107 = scmp.eq.s32.totalorder %s13, 1
      %p108 = por %p106, %p107
      %p109 = scmp.ne.s32.totalorder %s101, %s104
      %p110 = scmp.eq.s32.totalorder %s13, 0
      %p111 = por %p109, %p110
      %p112 = scmp.ne.s32.totalorder %s101, %s104
      %p113 = scmp.eq.s32.totalorder %s18, 1
      %p114 = por %p112, %p113
      %p115 = scmp.ne.s32.totalorder %s104, %s105
      %p116 = scmp.eq.s32.totalorder %s18, 0
      %p117 = por %p115, %p116
      %p118 = scmp.ne.s32.totalorder %s104, %s105
      %p119 = scmp.eq.s32.totalorder %s19, 1
      %p120 = por %p118, %p119
      %p122 = scmp.ne.s32.totalorder %s105, %s121
      %p123 = scmp.eq.s32.totalorder %s19, 0
      %p124 = por %p122, %p123
      %p125 = scmp.le.s32.totalorder 1, %s13
      %p126 = scmp.lt.s32.totalorder %s13, 3
      %p127 = pnand %p125, %p126
      %p128 = pneg %p127
      // Predicated region
      $region9: #{model_forward.12} parent=5 // pred_check
        _
      $region10: #{model_forward.12} parent=5 // pred_check_branch
        %130 = sbr.rel (%p127) target = $region12
      $region11: #{model_forward.12} parent=5 // pred_region
        %s131 = ssub.s32 %s13, 1
      $region12: #{model_forward.12} parent=5 // pred_fallthru
        _
      %p132 = scmp.lt.s32.totalorder %s13, 2
      // Predicated region
      $region13: #{model_forward.12} parent=5 // pred_check
        %p133 = pneg %p132
      $region14: #{model_forward.12} parent=5 // pred_check_branch
        %135 = sbr.rel (%p133) target = $region16
      $region15: #{model_forward.12} parent=5 // pred_region
        // Predicated region
        $region17: #{model_forward.12} parent=15 // pred_check
          %p136 = pneg %p33
        $region18: #{model_forward.12} parent=15 // pred_check_branch
          %138 = sbr.rel (%p136) target = $region20
        $region19: #{model_forward.12} parent=15 // pred_region
          %p139 = scmp.lt.s32.totalorder %s13, 1
          %s140 = scalar_select %p139, %s13, 1
          %s141 = smul.addr %s140, 4
          %s142 = scalar_lea.vmem %s0, %s141
        $region20: #{model_forward.12} parent=15 // pred_fallthru
          _
        // Predicated region
        $region21: #{model_forward.12} parent=15 // pred_check
          %p143 = pneg %p59
        $region22: #{model_forward.12} parent=15 // pred_check_branch
          %145 = sbr.rel (%p143) target = $region24
        $region23: #{model_forward.12} parent=15 // pred_region
          %p146 = scmp.lt.s32.totalorder %s13, 1
          %s147 = scalar_select %p146, %s13, 1
          %s148 = scalar_lea.vmem %s1, %s147
        $region24: #{model_forward.12} parent=15 // pred_fallthru
          _
      $region16: #{model_forward.12} parent=5 // pred_fallthru
        _
      %p149 = scmp.le.s32.totalorder 1, %s13
      %p150 = scmp.lt.s32.totalorder %s13, 3
      %p151 = pnand %p149, %p150
      %p152 = pneg %p151
      // Predicated region
      $region25: #{model_forward.12} parent=5 // pred_check
        _
      $region26: #{model_forward.12} parent=5 // pred_check_branch
        %154 = sbr.rel (%p151) target = $region28
      $region27: #{model_forward.12} parent=5 // pred_region
        %s155 = ssub.s32 %s13, 1
        %p156 = scmp.lt.s32.totalorder %s18, 1
        %s157 = scalar_select %p156, %s18, 1
        %s158 = smul.addr %s157, 4
        %s159 = scalar_lea.vmem %s0, %s158
        %p160 = pneg %p39
        %p161 = pneg %p36
        %p162 = scmp.lt.s32.totalorder %s18, 1
        %s163 = scalar_select %p162, %s18, 1
        %s164 = scalar_lea.vmem %s1, %s163
        %p165 = pneg %p65
        %p166 = pneg %p62
        %p167 = pneg %p91
        %p168 = pneg %p88
        %p169 = scmp.lt.s32.totalorder %s18, 1
        %s170 = scalar_select %p169, %s18, 1
        %s171 = smul.addr %s170, 4
        %s172 = scalar_lea.vmem %s2, %s171
        %p173 = pneg %p117
        %p174 = pneg %p114
        %s175 = sand.u32 %s104, 1
        %s176 = scalar_lea.sflag [#allocation3], %s175
        %s177 = sand.u32 %s104, 1
        %s178 = smul.addr %s177, 8
        %s179 = scalar_lea.vmem [#allocation2], %s178
        %p180 = scmp.lt.s32.totalorder %s18, 1
        %s181 = scalar_select %p180, %s18, 1
        %s182 = smul.addr %s181, 4
        %s183 = scalar_lea.vmem %s0, %s182
        %p184 = scmp.lt.s32.totalorder %s18, 1
        %s185 = scalar_select %p184, %s18, 1
        %s186 = scalar_lea.vmem %s1, %s185
        %p187 = scmp.lt.s32.totalorder %s18, 1
        %s188 = scalar_select %p187, %s18, 1
        %s189 = smul.addr %s188, 4
        %s190 = scalar_lea.vmem %s2, %s189
        %v192 = vld [vmem:[%s186] sm:$0x1]
        %v193 = vld [vmem:[%s183] sm:$0xf]
        %v195 = vunpack.c.l.b16 %v193
        %v196 = vpack.c.b16 %v195, %v195
        %197 = vrot.lane.b32.xlu0 %v196, 96
        %v198 = vpop.permute.xlu0 %197
        %vm199 = vcmask 130048
        %v201 = vsel %vm199, %v193, 0
        %v204 = vsel %vm199, %v198, 0
        %206 = vmatpush.bf16.xpose.msra.mxu0 0
        %207 = vmatpush.bf16.xpose.msra.mxu0 0
        %208 = vmatpush.bf16.xpose.msra.mxu0 0
        %209 = vmatpush.bf16.xpose.msra.mxu0 0
        %210 = vmatpush.bf16.xpose.msra.mxu0 0
        %211 = vmatpush.bf16.xpose.msra.mxu0 0
        %212 = vmatpush.bf16.xpose.msra.mxu0 0
        %213 = vmatpush.bf16.xpose.msra.mxu0 %v204
        %214 = vmatmul.bf16.gmra.mxu0 %v201
        %v215 = vpop.f32.mrf.mxu0
        %v216 = vadd.f32 0.0, %v215
        %v217 = vpop.f32.mrf.mxu0
        %218 = vdwg.mxu0
        %v219 = vmul.f32 %v216, 0.25
        %v221 = vperm.slane %v192, 0
        %v223 = vadd.f32 %v219, %v221
        %vm224 = vcmask 64512
        %v225 = vsel %vm224, %v223, -inf
        %226 = vmax.xlane.f32.xlu0 %v225
        %v227 = vpop.xlane.xlu0 %226
        %v228 = vsub.f32 %v223, %v227
        %v229 = vmul.f32 %v228, 1.442695
        %v230 = vpow.pop %v229
        %v231 = vsel %vm224, %v230, 0.0
        %232 = vadd.xlane.f32.xlu0 %v231
        %v233 = vpop.xlane.xlu0 %232
        %v234 = vrcp.pop %v233
        %v235 = vmul.f32 %v233, %v234
        %v236 = vsub.f32 1.0, %v235
        %v237 = vmul.f32 %v234, %v236
        %v238 = vadd.f32 %v234, %v237
        %vm239 = vweird.f32 %v233
        %vm240 = vweird.f32 %v234
        %vm241 = vmor %vm239, %vm240
        %v242 = vsel %vm241, %v234, %v238
        %v243 = vand.u32 2147483647, %v233
        %vm244 = vcmp.eq.f32.partialorder %v243, 8.507059e+37
        %v245 = vand.u32 %v233, 2147483648
        %v246 = vor.u32 1.1754944e-38, %v245
        %v247 = vsel %vm244, %v246, %v242
        %v248 = vmul.f32 %v230, %v247
        %v249 = vpack.c.bf16 %v248, %v248
        %250 = vrot.lane.b32.xlu0 %v196, 64
        %v251 = vpop.permute.xlu0 %250
        %v253 = vsel %vm224, %v249, 0
        %vm255 = vcmask 1043456
        %v257 = vsel %vm255, %v251, 0
        %259 = vmatpush.bf16.msra.mxu0 0
        %260 = vmatpush.bf16.msra.mxu0 0
        %261 = vmatpush.bf16.msra.mxu0 0
        %262 = vmatpush.bf16.msra.mxu0 0
        %263 = vmatpush.bf16.msra.mxu0 0
        %264 = vmatpush.bf16.msra.mxu0 0
        %265 = vmatpush.bf16.msra.mxu0 0
        %266 = vmatpush.bf16.msra.mxu0 %v257
        %267 = vmatmul.bf16.gmra.mxu0 %v253
        %v268 = vpop.f32.mrf.mxu0
        %v269 = vadd.f32 0.0, %v268
        %v270 = vpop.f32.mrf.mxu0
        %271 = vdwg.mxu0
        %vm272 = vcmask 60416
        %273 = vst.msk [vmem:[%s179] sm:$0xf] %vm272, %v249
        %v274 = vld [vmem:[%s183] sm:$0xf]
        %v276 = vunpack.c.l.b16 %v274
        %v277 = vpack.c.b16 %v276, %v276
        %278 = vrot.lane.b32.xlu0 %v277, 112
        %v279 = vpop.permute.xlu0 %278
        %280 = vrot.lane.b32.xlu0 %v277, 80
        %v281 = vpop.permute.xlu0 %280
        %v283 = vsel %vm199, %v279, 0
        %v286 = vsel %vm199, %v281, 0
        %288 = vmatpush.bf16.xpose.msra.mxu0 0
        %289 = vmatpush.bf16.xpose.msra.mxu0 0
        %290 = vmatpush.bf16.xpose.msra.mxu0 0
        %291 = vmatpush.bf16.xpose.msra.mxu0 0
        %292 = vmatpush.bf16.xpose.msra.mxu0 0
        %293 = vmatpush.bf16.xpose.msra.mxu0 0
        %294 = vmatpush.bf16.xpose.msra.mxu0 0
        %295 = vmatpush.bf16.xpose.msra.mxu0 %v286
        %296 = vmatmul.bf16.gmra.mxu0 %v283
        %v297 = vpop.f32.mrf.mxu0
        %v298 = vadd.f32 0.0, %v297
        %v299 = vpop.f32.mrf.mxu0
        %300 = vdwg.mxu0
        %v301 = vmul.f32 %v298, 0.25
        %v302 = vadd.f32 %v301, %v221
        %v303 = vsel %vm224, %v302, -inf
        %304 = vmax.xlane.f32.xlu0 %v303
        %v305 = vpop.xlane.xlu0 %304
        %v306 = vsub.f32 %v302, %v305
        %v307 = vmul.f32 %v306, 1.442695
        %v308 = vpow.pop %v307
        %v309 = vsel %vm224, %v308, 0.0
        %310 = vadd.xlane.f32.xlu0 %v309
        %v311 = vpop.xlane.xlu0 %310
        %v312 = vrcp.pop %v311
        %v313 = vmul.f32 %v311, %v312
        %v314 = vsub.f32 1.0, %v313
        %v315 = vmul.f32 %v312, %v314
        %v316 = vadd.f32 %v312, %v315
        %vm317 = vweird.f32 %v311
        %vm318 = vweird.f32 %v312
        %vm319 = vmor %vm317, %vm318
        %v320 = vsel %vm319, %v312, %v316
        %v321 = vand.u32 2147483647, %v311
        %vm322 = vcmp.eq.f32.partialorder %v321, 8.507059e+37
        %v323 = vand.u32 %v311, 2147483648
        %v324 = vor.u32 1.1754944e-38, %v323
        %v325 = vsel %vm322, %v324, %v320
        %v326 = vmul.f32 %v308, %v325
        %v327 = vpack.c.bf16 %v326, %v326
        %328 = vrot.lane.b32.xlu0 %v277, 48
        %v329 = vpop.permute.xlu0 %328
        %v331 = vsel %vm224, %v327, 0
        %v334 = vsel %vm255, %v329, 0
        %336 = vmatpush.bf16.msra.mxu0 0
        %337 = vmatpush.bf16.msra.mxu0 0
        %338 = vmatpush.bf16.msra.mxu0 0
        %339 = vmatpush.bf16.msra.mxu0 0
        %340 = vmatpush.bf16.msra.mxu0 0
        %341 = vmatpush.bf16.msra.mxu0 0
        %342 = vmatpush.bf16.msra.mxu0 0
        %343 = vmatpush.bf16.msra.mxu0 %v334
        %344 = vmatmul.bf16.gmra.mxu0 %v331
        %v345 = vpop.f32.mrf.mxu0
        %v346 = vadd.f32 0.0, %v345
        %v347 = vpop.f32.mrf.mxu0
        %348 = vdwg.mxu0
        %s349 = scalar_lea.vmem %s179, 4 [#allocation2]
        %350 = vst.msk [vmem:[%s349] sm:$0xf] %vm272, %v327
        %352 = vrot.lane.b32.xlu0 %v346, 16
        %v353 = vpop.permute.xlu0 %352
        %v355 = vsel %vm199, %v269, %v353
        %v356 = vpack.c.bf16 %v355, %v355
        %vm357 = vcmask 257024
        %358 = vst.msk [vmem:[%s190] sm:$0xf] %vm357, %v356
        %p359 = scmp.lt.s32.totalorder %s18, 1
        %s360 = scalar_select %p359, %s18, 1
        %s361 = smul.addr %s360, 4
        %s362 = scalar_lea.vmem %s2, %s361
        %s363 = sand.u32 %s104, 1
        %s364 = scalar_lea.sflag [#allocation3], %s363
        %s365 = sand.u32 %s104, 1
        %s366 = smul.addr %s365, 8
        %s367 = scalar_lea.vmem [#allocation2], %s366
        // Predicated region
        $region29: #{model_forward.12} parent=27 // pred_check
          %p368 = pneg %p88
        $region30: #{model_forward.12} parent=27 // pred_check_branch
          %370 = sbr.rel (%p368) target = $region32
        $region31: #{model_forward.12} parent=27 // pred_region
          _
        $region32: #{model_forward.12} parent=27 // pred_fallthru
          _
        // Predicated region
        $region33: #{model_forward.12} parent=27 // pred_check
          %p371 = pneg %p114
        $region34: #{model_forward.12} parent=27 // pred_check_branch
          %373 = sbr.rel (%p371) target = $region36
        $region35: #{model_forward.12} parent=27 // pred_region
          %375 = vsyncadd %s364, 0
          %s376 = smul.addr %s18, 2
          %s377 = smul.addr %s376, 4
          %s378 = scalar_lea.hbm %s3, %s377
          %s379 = sshll.u32 %s367, 4
          %s380 = int_to_ptr.vmem [resolvable:$true] %s379
          %s381 = sshll.u32 %s378, 4
          %s382 = int_to_ptr.hbm [resolvable:$true] %s381
          %387 = dma.vmem_to_hbm [thread:$0]  %s380, 128, %s382, %s364, 64, 64, 4
        $region36: #{model_forward.12} parent=27 // pred_fallthru
          _
      $region28: #{model_forward.12} parent=5 // pred_fallthru
        _
      %p388 = scmp.le.s32.totalorder 2, %s13
      // Predicated region
      $region37: #{model_forward.12} parent=5 // pred_check
        %p389 = pneg %p388
      $region38: #{model_forward.12} parent=5 // pred_check_branch
        %391 = sbr.rel (%p389) target = $region40
      $region39: #{model_forward.12} parent=5 // pred_region
        %s392 = ssub.s32 %s13, 2
        // Predicated region
        $region41: #{model_forward.12} parent=39 // pred_check
          %p393 = pneg %p94
        $region42: #{model_forward.12} parent=39 // pred_check_branch
          %395 = sbr.rel (%p393) target = $region44
        $region43: #{model_forward.12} parent=39 // pred_region
          %p396 = scmp.lt.s32.totalorder %s19, 1
          %s397 = scalar_select %p396, %s19, 1
          %s398 = smul.addr %s397, 4
          %s399 = scalar_lea.vmem %s2, %s398
        $region44: #{model_forward.12} parent=39 // pred_fallthru
          _
        // Predicated region
        $region45: #{model_forward.12} parent=39 // pred_check
          %p400 = pneg %p120
        $region46: #{model_forward.12} parent=39 // pred_check_branch
          %402 = sbr.rel (%p400) target = $region48
        $region47: #{model_forward.12} parent=39 // pred_region
          %s403 = sand.u32 %s105, 1
          %s404 = scalar_lea.sflag [#allocation3], %s403
          %s405 = sand.u32 %s105, 1
          %s406 = smul.addr %s405, 8
          %s407 = scalar_lea.vmem [#allocation2], %s406
          %409 = dma.done %s404, 128
        $region48: #{model_forward.12} parent=39 // pred_fallthru
          _
      $region40: #{model_forward.12} parent=5 // pred_fallthru
        _
    $region6: #{model_forward.12} parent=1 // loop_footer
      %s17 = sadd.s32 1, %s13
    $region7: #{model_forward.12} parent=1 // loop_footer_branch
      %12 = sbr.rel target = $region3
    $region8: #{model_forward.12} parent=1 // loop_exit
      _
    %410 = vsyncpa [#allocation3], 1
    %s411 = scalar_lea.sflag [#allocation3], 1
    %412 = vsyncpa %s411, 1

// kernel: model_forward.14
$region0: #{model_forward.14}
  #allocation0 [shape = 'u32[]', space=smem, size = 0x4, offset = 0x4, fixed_abs, tag = 'smem constant byte address 0x4 - core index']
  #allocation1 [shape = 'u32[72,128]{1,0:T(1,128)}', space=vmem, size = 0x9000, scoped, tag = 'internal scratch']
  #allocation2 [shape = 'f32[16,128]{1,0:T(8,128)}', space=vmem, size = 0x2000, scoped, tag = 'scratch operand']
  %s0 = inlined_call_operand.vmem [shape: bf16[16,128], index: 0, kind: input, shape index: {}]
  %s1 = inlined_call_operand.vmem [shape: bf16[128,128], index: 1, kind: input, shape index: {}]
  %s2 = inlined_call_operand.vmem [shape: f32[1,128], index: 2, kind: input, shape index: {}]
  %s3 = inlined_call_operand.vmem [shape: bf16[16,128], index: 3, kind: output, shape index: {}]
  %s4 = sld [smem:[#allocation0]]
  $region30: #{model_forward.14} parent=0
    _
  %s6 = ssub.s32 1, %s4
  %s7 = scalar_select 0, %s6, %s4
  // Predicated region
  $region2: #{model_forward.14} parent=0 // pred_check
    _
  $region3: #{model_forward.14} parent=0 // pred_check_branch
    %9 = sbr.rel (0) target = $region5
  $region4: #{model_forward.14} parent=0 // pred_region
    _
  $region5: #{model_forward.14} parent=0 // pred_fallthru
    _
  // Predicated region
  $region6: #{model_forward.14} parent=0 // pred_check
    _
  $region7: #{model_forward.14} parent=0 // pred_check_branch
    %11 = sbr.rel (0) target = $region9
  $region8: #{model_forward.14} parent=0 // pred_region
    _
  $region9: #{model_forward.14} parent=0 // pred_fallthru
    _
  // Predicated region
  $region10: #{model_forward.14} parent=0 // pred_check
    _
  $region11: #{model_forward.14} parent=0 // pred_check_branch
    %13 = sbr.rel (0) target = $region13
  $region12: #{model_forward.14} parent=0 // pred_region
    _
  $region13: #{model_forward.14} parent=0 // pred_fallthru
    _
  %p14 = scmp.eq.s32.totalorder 0, 0
  // Predicated region
  $region14: #{model_forward.14} parent=0 // pred_check
    %p15 = pneg %p14
  $region15: #{model_forward.14} parent=0 // pred_check_branch
    %17 = sbr.rel (%p15) target = $region17
  $region16: #{model_forward.14} parent=0 // pred_region
    %18 = vst [vmem:[#allocation2] sm:$0xff] 0.0
    %19 = vst [vmem:[#allocation2 + $0x8] sm:$0xff] 0.0
  $region17: #{model_forward.14} parent=0 // pred_fallthru
    _
  %v20 = vld [vmem:[#allocation2] sm:$0xff]
  %v21 = vld [vmem:[#allocation2 + $0x8] sm:$0xff]
  %v22 = vld [vmem:[%s0] sm:$0xf]
  %v23 = vld [vmem:[%s0 + $0x4] sm:$0xf]
  %v24 = vld [vmem:[%s1] sm:$0xf]
  %v25 = vld [vmem:[%s1 + $0x4] sm:$0xf]
  %v26 = vld [vmem:[%s1 + $0x8] sm:$0xf]
  %v27 = vld [vmem:[%s1 + $0xc] sm:$0xf]
  %v28 = vld [vmem:[%s1 + $0x10] sm:$0xf]
  %v29 = vld [vmem:[%s1 + $0x14] sm:$0xf]
  %v30 = vld [vmem:[%s1 + $0x18] sm:$0xf]
  %v31 = vld [vmem:[%s1 + $0x1c] sm:$0xf]
  %v32 = vld [vmem:[%s1 + $0x20] sm:$0xf]
  %v33 = vld [vmem:[%s1 + $0x24] sm:$0xf]
  %v34 = vld [vmem:[%s1 + $0x28] sm:$0xf]
  %v35 = vld [vmem:[%s1 + $0x2c] sm:$0xf]
  %v36 = vld [vmem:[%s1 + $0x30] sm:$0xf]
  %v37 = vld [vmem:[%s1 + $0x34] sm:$0xf]
  %v38 = vld [vmem:[%s1 + $0x38] sm:$0xf]
  %v39 = vld [vmem:[%s1 + $0x3c] sm:$0xf]
  %v42 = vunpack.c.l.b16 %v22
  %v43 = vunpack.c.l.b16 %v23
  %v44 = vpack.c.b16 %v43, %v42
  %v62 = vunpack.c.l.b16 %v24
  %v63 = vunpack.c.l.b16 %v25
  %v64 = vunpack.c.l.b16 %v26
  %v65 = vunpack.c.l.b16 %v27
  %v66 = vunpack.c.l.b16 %v28
  %v67 = vunpack.c.l.b16 %v29
  %v68 = vunpack.c.l.b16 %v30
  %v69 = vunpack.c.l.b16 %v31
  %v70 = vunpack.c.l.b16 %v32
  %v71 = vunpack.c.l.b16 %v33
  %v72 = vunpack.c.l.b16 %v34
  %v73 = vunpack.c.l.b16 %v35
  %v74 = vunpack.c.l.b16 %v36
  %v75 = vunpack.c.l.b16 %v37
  %v76 = vunpack.c.l.b16 %v38
  %v77 = vunpack.c.l.b16 %v39
  %v78 = vpack.c.b16 %v63, %v62
  %v79 = vpack.c.b16 %v65, %v64
  %v80 = vpack.c.b16 %v67, %v66
  %v81 = vpack.c.b16 %v69, %v68
  %v82 = vpack.c.b16 %v71, %v70
  %v83 = vpack.c.b16 %v73, %v72
  %v84 = vpack.c.b16 %v75, %v74
  %v85 = vpack.c.b16 %v77, %v76
  %94 = vmatpush.bf16.msra.mxu0 %v85
  %95 = vmatpush.bf16.msra.mxu0 %v84
  %96 = vmatpush.bf16.msra.mxu0 %v83
  %97 = vmatpush.bf16.msra.mxu0 %v82
  %98 = vmatpush.bf16.msra.mxu0 %v81
  %99 = vmatpush.bf16.msra.mxu0 %v80
  %100 = vmatpush.bf16.msra.mxu0 %v79
  %101 = vmatpush.bf16.msra.mxu0 %v78
  %102 = vmatmul.bf16.gmra.mxu0 %v44
  %v103 = vpop.f32.mrf.mxu0
  %v104 = vadd.f32 0.0, %v103
  %v105 = vpop.f32.mrf.mxu0
  %v106 = vadd.f32 0.0, %v105
  %107 = vdwg.mxu0
  %v108 = vadd.f32 %v20, %v104
  %v109 = vadd.f32 %v21, %v106
  %110 = vst [vmem:[#allocation2] sm:$0xff] %v108
  %111 = vst [vmem:[#allocation2 + $0x8] sm:$0xff] %v109
  // Predicated region
  $region18: #{model_forward.14} parent=0 // pred_check
    %p112 = pneg %p14
  $region19: #{model_forward.14} parent=0 // pred_check_branch
    %114 = sbr.rel (%p112) target = $region21
  $region20: #{model_forward.14} parent=0 // pred_region
    %v115 = vld [vmem:[#allocation2] sm:$0xff]
    %v116 = vld [vmem:[#allocation2 + $0x8] sm:$0xff]
    %v117 = vld [vmem:[%s2] sm:$0x1]
    %v119 = vperm.slane %v117, 0
    %v121 = vadd.f32 %v115, %v119
    %v122 = vadd.f32 %v116, %v119
    %v123 = vmul.f32 %v121, %v121
    %v124 = vmul.f32 %v122, %v122
    %v125 = vmul.f32 %v121, %v123
    %v126 = vmul.f32 %v122, %v124
    %v127 = vmul.f32 %v125, 0.044715
    %v128 = vmul.f32 %v126, 0.044715
    %v129 = vadd.f32 %v121, %v127
    %v130 = vadd.f32 %v122, %v128
    %v131 = vmul.f32 %v129, 0.7978846
    %v132 = vmul.f32 %v130, 0.7978846
    %v133 = vtanh.pop %v131
    %v134 = vtanh.pop %v132
    %v135 = vadd.f32 %v133, 1.0
    %v136 = vadd.f32 %v134, 1.0
    %v137 = vmul.f32 %v135, 0.5
    %v138 = vmul.f32 %v136, 0.5
    %v139 = vmul.f32 %v121, %v137
    %v140 = vmul.f32 %v122, %v138
    %v141 = vpack.c.bf16 %v139, %v139
    %v142 = vpack.c.bf16 %v140, %v140
    %143 = vst [vmem:[%s3] sm:$0xf] %v141
    %144 = vst [vmem:[%s3 + $0x4] sm:$0xf] %v142
  $region21: #{model_forward.14} parent=0 // pred_fallthru
    _
  // Predicated region
  $region22: #{model_forward.14} parent=0 // pred_check
    _
  $region23: #{model_forward.14} parent=0 // pred_check_branch
    %146 = sbr.rel (0) target = $region25
  $region24: #{model_forward.14} parent=0 // pred_region
    _
  $region25: #{model_forward.14} parent=0 // pred_fallthru
    _
  // Predicated region
  $region26: #{model_forward.14} parent=0 // pred_check
    _
  $region27: #{model_forward.14} parent=0 // pred_check_branch
    %148 = sbr.rel (0) target = $region29
  $region28: #{model_forward.14} parent=0 // pred_region
    _
  $region29: #{model_forward.14} parent=0 // pred_fallthru
    _

// kernel: model_forward.21
$region0: #{model_forward.21}
  #allocation0 [shape = 'u32[]', space=smem, size = 0x4, offset = 0x4, fixed_abs, tag = 'smem constant byte address 0x4 - core index']
  #allocation1 [shape = 'u32[72,128]{1,0:T(1,128)}', space=vmem, size = 0x9000, scoped, tag = 'internal scratch']
  #allocation2 [shape = 'f32[48,128]{1,0:T(8,128)}', space=vmem, size = 0x6000, scoped, tag = 'scratch operand']
  %s0 = inlined_call_operand.vmem [shape: bf16[48,128], index: 0, kind: input, shape index: {}]
  %s1 = inlined_call_operand.vmem [shape: bf16[128,128], index: 1, kind: input, shape index: {}]
  %s2 = inlined_call_operand.vmem [shape: f32[1,128], index: 2, kind: input, shape index: {}]
  %s3 = inlined_call_operand.vmem [shape: f32[48,128], index: 3, kind: output, shape index: {}]
  %s4 = sld [smem:[#allocation0]]
  $region30: #{model_forward.21} parent=0
    _
  %s6 = ssub.s32 1, %s4
  %s7 = scalar_select 0, %s6, %s4
  // Predicated region
  $region2: #{model_forward.21} parent=0 // pred_check
    _
  $region3: #{model_forward.21} parent=0 // pred_check_branch
    %9 = sbr.rel (0) target = $region5
  $region4: #{model_forward.21} parent=0 // pred_region
    _
  $region5: #{model_forward.21} parent=0 // pred_fallthru
    _
  // Predicated region
  $region6: #{model_forward.21} parent=0 // pred_check
    _
  $region7: #{model_forward.21} parent=0 // pred_check_branch
    %11 = sbr.rel (0) target = $region9
  $region8: #{model_forward.21} parent=0 // pred_region
    _
  $region9: #{model_forward.21} parent=0 // pred_fallthru
    _
  // Predicated region
  $region10: #{model_forward.21} parent=0 // pred_check
    _
  $region11: #{model_forward.21} parent=0 // pred_check_branch
    %13 = sbr.rel (0) target = $region13
  $region12: #{model_forward.21} parent=0 // pred_region
    _
  $region13: #{model_forward.21} parent=0 // pred_fallthru
    _
  %p14 = scmp.eq.s32.totalorder 0, 0
  // Predicated region
  $region14: #{model_forward.21} parent=0 // pred_check
    %p15 = pneg %p14
  $region15: #{model_forward.21} parent=0 // pred_check_branch
    %17 = sbr.rel (%p15) target = $region17
  $region16: #{model_forward.21} parent=0 // pred_region
    %18 = vst [vmem:[#allocation2] sm:$0xff] 0.0
    %19 = vst [vmem:[#allocation2 + $0x8] sm:$0xff] 0.0
    %20 = vst [vmem:[#allocation2 + $0x10] sm:$0xff] 0.0
    %21 = vst [vmem:[#allocation2 + $0x18] sm:$0xff] 0.0
    %22 = vst [vmem:[#allocation2 + $0x20] sm:$0xff] 0.0
    %23 = vst [vmem:[#allocation2 + $0x28] sm:$0xff] 0.0
  $region17: #{model_forward.21} parent=0 // pred_fallthru
    _
  %v24 = vld [vmem:[#allocation2] sm:$0xff]
  %v25 = vld [vmem:[#allocation2 + $0x8] sm:$0xff]
  %v26 = vld [vmem:[#allocation2 + $0x10] sm:$0xff]
  %v27 = vld [vmem:[#allocation2 + $0x18] sm:$0xff]
  %v28 = vld [vmem:[#allocation2 + $0x20] sm:$0xff]
  %v29 = vld [vmem:[#allocation2 + $0x28] sm:$0xff]
  %v30 = vld [vmem:[%s0] sm:$0xf]
  %v31 = vld [vmem:[%s0 + $0x4] sm:$0xf]
  %v32 = vld [vmem:[%s0 + $0x8] sm:$0xf]
  %v33 = vld [vmem:[%s0 + $0xc] sm:$0xf]
  %v34 = vld [vmem:[%s0 + $0x10] sm:$0xf]
  %v35 = vld [vmem:[%s0 + $0x14] sm:$0xf]
  %v36 = vld [vmem:[%s1] sm:$0xf]
  %v37 = vld [vmem:[%s1 + $0x4] sm:$0xf]
  %v38 = vld [vmem:[%s1 + $0x8] sm:$0xf]
  %v39 = vld [vmem:[%s1 + $0xc] sm:$0xf]
  %v40 = vld [vmem:[%s1 + $0x10] sm:$0xf]
  %v41 = vld [vmem:[%s1 + $0x14] sm:$0xf]
  %v42 = vld [vmem:[%s1 + $0x18] sm:$0xf]
  %v43 = vld [vmem:[%s1 + $0x1c] sm:$0xf]
  %v44 = vld [vmem:[%s1 + $0x20] sm:$0xf]
  %v45 = vld [vmem:[%s1 + $0x24] sm:$0xf]
  %v46 = vld [vmem:[%s1 + $0x28] sm:$0xf]
  %v47 = vld [vmem:[%s1 + $0x2c] sm:$0xf]
  %v48 = vld [vmem:[%s1 + $0x30] sm:$0xf]
  %v49 = vld [vmem:[%s1 + $0x34] sm:$0xf]
  %v50 = vld [vmem:[%s1 + $0x38] sm:$0xf]
  %v51 = vld [vmem:[%s1 + $0x3c] sm:$0xf]
  %v58 = vunpack.c.l.b16 %v30
  %v59 = vunpack.c.l.b16 %v31
  %v60 = vunpack.c.l.b16 %v32
  %v61 = vunpack.c.l.b16 %v33
  %v62 = vunpack.c.l.b16 %v34
  %v63 = vunpack.c.l.b16 %v35
  %v64 = vpack.c.b16 %v59, %v58
  %v65 = vpack.c.b16 %v61, %v60
  %v66 = vpack.c.b16 %v63, %v62
  %v86 = vunpack.c.l.b16 %v36
  %v87 = vunpack.c.l.b16 %v37
  %v88 = vunpack.c.l.b16 %v38
  %v89 = vunpack.c.l.b16 %v39
  %v90 = vunpack.c.l.b16 %v40
  %v91 = vunpack.c.l.b16 %v41
  %v92 = vunpack.c.l.b16 %v42
  %v93 = vunpack.c.l.b16 %v43
  %v94 = vunpack.c.l.b16 %v44
  %v95 = vunpack.c.l.b16 %v45
  %v96 = vunpack.c.l.b16 %v46
  %v97 = vunpack.c.l.b16 %v47
  %v98 = vunpack.c.l.b16 %v48
  %v99 = vunpack.c.l.b16 %v49
  %v100 = vunpack.c.l.b16 %v50
  %v101 = vunpack.c.l.b16 %v51
  %v102 = vpack.c.b16 %v87, %v86
  %v103 = vpack.c.b16 %v89, %v88
  %v104 = vpack.c.b16 %v91, %v90
  %v105 = vpack.c.b16 %v93, %v92
  %v106 = vpack.c.b16 %v95, %v94
  %v107 = vpack.c.b16 %v97, %v96
  %v108 = vpack.c.b16 %v99, %v98
  %v109 = vpack.c.b16 %v101, %v100
  %118 = vmatpush.bf16.msra.mxu0 %v109
  %119 = vmatpush.bf16.msra.mxu0 %v108
  %120 = vmatpush.bf16.msra.mxu0 %v107
  %121 = vmatpush.bf16.msra.mxu0 %v106
  %122 = vmatpush.bf16.msra.mxu0 %v105
  %123 = vmatpush.bf16.msra.mxu0 %v104
  %124 = vmatpush.bf16.msra.mxu0 %v103
  %125 = vmatpush.bf16.msra.mxu0 %v102
  %126 = vmatmul.bf16.gmra.mxu0 %v64
  %v127 = vpop.f32.mrf.mxu0
  %v128 = vadd.f32 0.0, %v127
  %v129 = vpop.f32.mrf.mxu0
  %v130 = vadd.f32 0.0, %v129
  %131 = vmatmul.bf16.gmra.mxu0 %v65
  %v132 = vpop.f32.mrf.mxu0
  %v133 = vadd.f32 0.0, %v132
  %v134 = vpop.f32.mrf.mxu0
  %v135 = vadd.f32 0.0, %v134
  %136 = vmatmul.bf16.gmra.mxu0 %v66
  %v137 = vpop.f32.mrf.mxu0
  %v138 = vadd.f32 0.0, %v137
  %v139 = vpop.f32.mrf.mxu0
  %v140 = vadd.f32 0.0, %v139
  %141 = vdwg.mxu0
  %v142 = vadd.f32 %v24, %v128
  %v143 = vadd.f32 %v25, %v130
  %v144 = vadd.f32 %v26, %v133
  %v145 = vadd.f32 %v27, %v135
  %v146 = vadd.f32 %v28, %v138
  %v147 = vadd.f32 %v29, %v140
  %148 = vst [vmem:[#allocation2] sm:$0xff] %v142
  %149 = vst [vmem:[#allocation2 + $0x8] sm:$0xff] %v143
  %150 = vst [vmem:[#allocation2 + $0x10] sm:$0xff] %v144
  %151 = vst [vmem:[#allocation2 + $0x18] sm:$0xff] %v145
  %152 = vst [vmem:[#allocation2 + $0x20] sm:$0xff] %v146
  %153 = vst [vmem:[#allocation2 + $0x28] sm:$0xff] %v147
  // Predicated region
  $region18: #{model_forward.21} parent=0 // pred_check
    %p154 = pneg %p14
  $region19: #{model_forward.21} parent=0 // pred_check_branch
    %156 = sbr.rel (%p154) target = $region21
  $region20: #{model_forward.21} parent=0 // pred_region
    %v157 = vld [vmem:[#allocation2] sm:$0xff]
    %v158 = vld [vmem:[#allocation2 + $0x8] sm:$0xff]
    %v159 = vld [vmem:[#allocation2 + $0x10] sm:$0xff]
    %v160 = vld [vmem:[#allocation2 + $0x18] sm:$0xff]
    %v161 = vld [vmem:[#allocation2 + $0x20] sm:$0xff]
    %v162 = vld [vmem:[#allocation2 + $0x28] sm:$0xff]
    %v163 = vld [vmem:[%s2] sm:$0x1]
    %v165 = vperm.slane %v163, 0
    %v167 = vadd.f32 %v157, %v165
    %v168 = vadd.f32 %v158, %v165
    %v169 = vadd.f32 %v159, %v165
    %v170 = vadd.f32 %v160, %v165
    %v171 = vadd.f32 %v161, %v165
    %v172 = vadd.f32 %v162, %v165
    %173 = vst [vmem:[%s3] sm:$0xff] %v167
    %174 = vst [vmem:[%s3 + $0x8] sm:$0xff] %v168
    %175 = vst [vmem:[%s3 + $0x10] sm:$0xff] %v169
    %176 = vst [vmem:[%s3 + $0x18] sm:$0xff] %v170
    %177 = vst [vmem:[%s3 + $0x20] sm:$0xff] %v171
    %178 = vst [vmem:[%s3 + $0x28] sm:$0xff] %v172
  $region21: #{model_forward.21} parent=0 // pred_fallthru
    _
  // Predicated region
  $region22: #{model_forward.21} parent=0 // pred_check
    _
  $region23: #{model_forward.21} parent=0 // pred_check_branch
    %180 = sbr.rel (0) target = $region25
  $region24: #{model_forward.21} parent=0 // pred_region
    _
  $region25: #{model_forward.21} parent=0 // pred_fallthru
    _
  // Predicated region
  $region26: #{model_forward.21} parent=0 // pred_check
    _
  $region27: #{model_forward.21} parent=0 // pred_check_branch
    %182 = sbr.rel (0) target = $region29
  $region28: #{model_forward.21} parent=0 // pred_region
    _
  $region29: #{model_forward.21} parent=0 // pred_fallthru
    _

</llo_original>
